<compile_context>
chip_gen: v5e
topology: v5e:2x2
jax: 0.10.0
libtpu: 0.0.40
codegen_flags: <defaults>
</compile_context>

<pallas_src>
import math
import functools

import numpy as np
import jax
import jax.numpy as jnp
from jax.experimental import pallas as pl
from jax.experimental.pallas import tpu as pltpu

# ---------------- small synthetic config ----------------
BATCH = 2
SEQ = 8
HIDDEN = 32
INTERMEDIATE = 64
NUM_HEADS = 4
NUM_KV_HEADS = 2
HEAD_DIM = 16
NUM_LAYERS = 2
RMS_EPS = 1e-6
ROPE_THETA = 10000.0
MASK_NEG = -1e9
GELU_C = 0.7978845608028654  # sqrt(2/pi)


# ---------------- kernel helpers ----------------
def _rmsnorm(x, w, eps):
    # x: (S, H) f32; w: (1, H) f32. Gemma RMSNorm: x * rsqrt(mean(x^2)+eps) * (1+w)
    var = jnp.mean(x * x, axis=-1, keepdims=True)
    return x * jax.lax.rsqrt(var + eps) * (1.0 + w)


# ---------------- the fused whole-model kernel ----------------
def gemma_kernel(x_ref, mask_ref, cosq_ref, sinq_ref, cosk_ref, sink_ref,
                 wqkvr_ref, wo_ref, wgu_ref, wd_ref, ln1_ref, ln2_ref, lnf_ref,
                 o_ref, h_ref, *,
                 num_heads, num_kv_heads, head_dim, inter, eps, normalizer):
    layer = pl.program_id(1)
    n_layers = pl.num_programs(1)
    D = head_dim
    Hq = num_heads
    Hkv = num_kv_heads
    n_rep = Hq // Hkv
    QD = Hq * D
    KD = Hkv * D
    S = x_ref.shape[0]
    bf16 = jnp.bfloat16

    # Initialize the VMEM-resident hidden state with the Gemma embed normalizer
    # at the first layer of every batch block.
    @pl.when(layer == 0)
    def _():
        h_ref[...] = x_ref[...] * normalizer

    h = h_ref[...]                        # (S, H) f32 residual stream

    # ---------- attention block ----------
    hn = _rmsnorm(h, ln1_ref[...], eps)

    # One fused projection: [q/sqrt(D) | k | v | rot(q)/sqrt(D) | rot(k)]
    z = jnp.dot(hn.astype(bf16), wqkvr_ref[...],
                preferred_element_type=jnp.float32)          # (S, 2*QD + 3*KD)
    q = z[:, 0:QD]
    k = z[:, QD:QD + KD]
    v = z[:, QD + KD:QD + 2 * KD]
    qr = z[:, QD + 2 * KD:2 * QD + 2 * KD]
    kr = z[:, 2 * QD + 2 * KD:]

    # RoPE: purely elementwise on the flat slabs (rotate_half folded into the
    # qr/kr weight columns; cos/sin pre-tiled per head in the wrapper).
    q_emb = q * cosq_ref[...] + qr * sinq_ref[...]           # (S, QD), pre-scaled
    k_emb = k * cosk_ref[...] + kr * sink_ref[...]           # (S, KD)

    # GQA grouping WITHOUT repeat_kv: per kv head, stack its n_rep query heads
    # along the row axis -> scores (Hkv, n_rep*S, S) against un-duplicated K/V.
    q_g = jnp.stack([
        jnp.concatenate(
            [q_emb[:, (hk * n_rep + r) * D:(hk * n_rep + r + 1) * D]
             for r in range(n_rep)], axis=0)
        for hk in range(Hkv)], axis=0)                       # (Hkv, n_rep*S, D)
    k_g = jnp.stack([k_emb[:, hk * D:(hk + 1) * D] for hk in range(Hkv)],
                    axis=0)                                  # (Hkv, S, D)
    v_g = jnp.stack([v[:, hk * D:(hk + 1) * D] for hk in range(Hkv)],
                    axis=0)                                  # (Hkv, S, D)

    s = jnp.einsum('gqd,gkd->gqk', q_g.astype(bf16), k_g.astype(bf16),
                   preferred_element_type=jnp.float32)       # (Hkv, n_rep*S, S)
    s = s + mask_ref[...][None]                              # additive mask
    s = s - jnp.max(s, axis=-1, keepdims=True)
    p = jnp.exp(s)
    p = p * pl.reciprocal(jnp.sum(p, axis=-1, keepdims=True), approx=True)

    ctx = jnp.einsum('gqk,gkd->gqd', p.astype(bf16), v_g.astype(bf16),
                     preferred_element_type=jnp.float32)     # (Hkv, n_rep*S, D)

    # Single o_proj matmul: rearrange ctx to (S, Hq*D) (lane concat, free at
    # real 128-aligned head_dim) and hit the MXU once with K = Hq*D.
    ctx_tok = jnp.concatenate(
        [ctx[hk, r * S:(r + 1) * S, :]
         for hk in range(Hkv) for r in range(n_rep)], axis=-1)  # (S, Hq*D)
    attn_out = jnp.dot(ctx_tok.astype(bf16), wo_ref[...],
                       preferred_element_type=jnp.float32)   # (S, H)

    h2 = h + attn_out

    # ---------- MLP block ----------
    hn2 = _rmsnorm(h2, ln2_ref[...], eps)
    gu = jnp.dot(hn2.astype(bf16), wgu_ref[...],
                 preferred_element_type=jnp.float32)         # (S, 2*I)
    g = gu[:, :inter]
    u = gu[:, inter:]
    gelu = 0.5 * g * (1.0 + jnp.tanh(GELU_C * (g + 0.044715 * g * g * g)))
    mlp = jnp.dot((gelu * u).astype(bf16), wd_ref[...],
                  preferred_element_type=jnp.float32)        # (S, H)

    h_new = h2 + mlp
    h_ref[...] = h_new

    # Final model RMSNorm, written once at the last layer of this batch block.
    @pl.when(layer == n_layers - 1)
    def _():
        o_ref[...] = _rmsnorm(h_new, lnf_ref[...], eps)


# ---------------- wrapper ----------------
def rotate_half_matrix(dim):
    # rotate_half(x) = cat((-x[..., 1::2], x[..., 0::2]), -1) == x @ P (exact)
    P = np.zeros((dim, dim), np.float32)
    half = dim // 2
    for j in range(half):
        P[2 * j + 1, j] = -1.0
        P[2 * j, half + j] = 1.0
    return jnp.asarray(P)


def rope_cos_sin(position_ids, dim, base):
    inv_freq = 1.0 / (base ** (jnp.arange(0, dim, 2, dtype=jnp.float32) / dim))
    freqs = position_ids.astype(jnp.float32)[:, :, None] * inv_freq[None, None, :]
    emb = jnp.concatenate([freqs, freqs], axis=-1)           # (B, S, D)
    return jnp.cos(emb), jnp.sin(emb)


def pack_params(params):
    """Exact repacking of per-layer weights into the fused kernel layout."""
    P = rotate_half_matrix(HEAD_DIM)
    scale = 1.0 / math.sqrt(HEAD_DIM)   # folded into q columns (pack-time free)
    wqkvr, wo, wgu, wd, ln1, ln2 = [], [], [], [], [], []
    for lp in params['layers']:
        wq, wk, wv = lp['wq'], lp['wk'], lp['wv']
        wq_rot = (wq.reshape(HIDDEN, NUM_HEADS, HEAD_DIM) @ P
                  ).reshape(HIDDEN, NUM_HEADS * HEAD_DIM)
        wk_rot = (wk.reshape(HIDDEN, NUM_KV_HEADS, HEAD_DIM) @ P
                  ).reshape(HIDDEN, NUM_KV_HEADS * HEAD_DIM)
        wqkvr.append(jnp.concatenate(
            [wq * scale, wk, wv, wq_rot * scale, wk_rot], axis=1))
        wo.append(lp['wo'])                                  # (Hq*D, H)
        wgu.append(jnp.concatenate([lp['wg'], lp['wu']], axis=1))
        wd.append(lp['wd'])
        ln1.append(lp['ln1'])
        ln2.append(lp['ln2'])
    stack = lambda xs: jnp.stack(xs, axis=0)
    return dict(
        wqkvr=stack(wqkvr).astype(jnp.bfloat16),             # (L, H, 2*QD+3*KD)
        wo=stack(wo).astype(jnp.bfloat16),                   # (L, Hq*D, H)
        wgu=stack(wgu).astype(jnp.bfloat16),                 # (L, H, 2*I)
        wd=stack(wd).astype(jnp.bfloat16),                   # (L, I, H)
        ln1=stack(ln1), ln2=stack(ln2),                      # (L, 1, H) f32
        final_ln=params['final_ln'])                         # (1, H) f32


def run_gemma(x, mask, cos_q, sin_q, cos_k, sin_k, p):
    B, S, H = x.shape
    L = p['wqkvr'].shape[0]

    kernel = functools.partial(
        gemma_kernel, num_heads=NUM_HEADS, num_kv_heads=NUM_KV_HEADS,
        head_dim=HEAD_DIM, inter=INTERMEDIATE, eps=RMS_EPS,
        normalizer=float(HIDDEN) ** 0.5)

    def per_batch(arr):   # leading batch axis, squeezed out of the kernel ref
        return pl.BlockSpec((None,) + tuple(arr.shape[1:]),
                            lambda b, l: (b, 0, 0))

    def per_layer(arr):   # leading layer axis, squeezed out of the kernel ref
        return pl.BlockSpec((None,) + tuple(arr.shape[1:]),
                            lambda b, l: (l, 0, 0))

    in_specs = [
        per_batch(x), per_batch(mask),
        per_batch(cos_q), per_batch(sin_q), per_batch(cos_k), per_batch(sin_k),
        per_layer(p['wqkvr']), per_layer(p['wo']),
        per_layer(p['wgu']), per_layer(p['wd']),
        per_layer(p['ln1']), per_layer(p['ln2']),
        pl.BlockSpec(tuple(p['final_ln'].shape), lambda b, l: (0, 0)),
    ]

    return pl.pallas_call(
        kernel,
        out_shape=jax.ShapeDtypeStruct((B, S, H), jnp.float32),
        grid_spec=pltpu.PrefetchScalarGridSpec(
            num_scalar_prefetch=0,
            grid=(B, L),                         # batch parallel, layers serial
            in_specs=in_specs,
            out_specs=pl.BlockSpec((None, S, H), lambda b, l: (b, 0, 0)),
            scratch_shapes=[pltpu.VMEM((S, H), jnp.float32)]),
        compiler_params=pltpu.CompilerParams(
            dimension_semantics=("parallel", "arbitrary"),
            # explicit budget, safe on v5e/v6e (128 MiB) and v7x (64 MiB)
            vmem_limit_bytes=32 * 1024 * 1024),
    )(x, mask, cos_q, sin_q, cos_k, sin_k,
      p['wqkvr'], p['wo'], p['wgu'], p['wd'], p['ln1'], p['ln2'], p['final_ln'])


def gemma_model_forward(inputs_embeds, attention_mask, position_ids, params):
    B, S, H = inputs_embeds.shape
    n_rep = NUM_HEADS // NUM_KV_HEADS
    cos, sin = rope_cos_sin(position_ids, HEAD_DIM, ROPE_THETA)   # (B, S, D)
    packed = pack_params(params)

    # Pre-tile cos/sin per head so in-kernel RoPE is a flat elementwise op.
    cos_q = jnp.tile(cos, (1, 1, NUM_HEADS))        # (B, S, Hq*D)
    sin_q = jnp.tile(sin, (1, 1, NUM_HEADS))
    cos_k = jnp.tile(cos, (1, 1, NUM_KV_HEADS))     # (B, S, Hkv*D)
    sin_k = jnp.tile(sin, (1, 1, NUM_KV_HEADS))

    # Per-batch additive mask, tiled along the query axis once per kv-group
    # query stack -> kernel adds it to the (Hkv, n_rep*S, S) scores directly.
    mask_tiled = jnp.concatenate([attention_mask] * n_rep, axis=1)  # (B, nrS, S)

    return run_gemma(inputs_embeds, mask_tiled.astype(jnp.float32),
                     cos_q, sin_q, cos_k, sin_k, packed)


# ---------------- deterministic parameter init (mirrors torch layout) ----------------
def init_params(key):
    layers = []
    for li in range(NUM_LAYERS):
        keys = jax.random.split(jax.random.fold_in(key, li), 9)

        def w(k, shape, scale=0.05):
            return jax.random.normal(k, shape, jnp.float32) * scale

        layers.append(dict(
            wq=w(keys[0], (HIDDEN, NUM_HEADS * HEAD_DIM)),
            wk=w(keys[1], (HIDDEN, NUM_KV_HEADS * HEAD_DIM)),
            wv=w(keys[2], (HIDDEN, NUM_KV_HEADS * HEAD_DIM)),
            wo=w(keys[3], (NUM_HEADS * HEAD_DIM, HIDDEN)),
            wg=w(keys[4], (HIDDEN, INTERMEDIATE)),
            wu=w(keys[5], (HIDDEN, INTERMEDIATE)),
            wd=w(keys[6], (INTERMEDIATE, HIDDEN)),
            ln1=w(keys[7], (1, HIDDEN), 0.1),
            ln2=w(keys[8], (1, HIDDEN), 0.1),
        ))
    final_ln = jax.random.normal(jax.random.fold_in(key, 999),
                                 (1, HIDDEN), jnp.float32) * 0.1
    return dict(layers=layers, final_ln=final_ln)


# ---------------- pure-JAX f32 reference (mirrors the torch module) ----------------
def _ref_rotate_half(x):
    x1 = x[..., 0::2]
    x2 = x[..., 1::2]
    return jnp.concatenate((-x2, x1), axis=-1)


def _ref_rmsnorm(x, w):
    var = jnp.mean(x * x, axis=-1, keepdims=True)
    return x * jax.lax.rsqrt(var + RMS_EPS) * (1.0 + w)


def _ref_layer(h, mask, cos, sin, lp):
    B, S, H = h.shape
    D = HEAD_DIM
    n_rep = NUM_HEADS // NUM_KV_HEADS
    x = _ref_rmsnorm(h, lp['ln1'])
    q = (x @ lp['wq']).reshape(B, S, NUM_HEADS, D).transpose(0, 2, 1, 3)
    k = (x @ lp['wk']).reshape(B, S, NUM_KV_HEADS, D).transpose(0, 2, 1, 3)
    v = (x @ lp['wv']).reshape(B, S, NUM_KV_HEADS, D).transpose(0, 2, 1, 3)
    cos4, sin4 = cos[:, None], sin[:, None]
    q = q * cos4 + _ref_rotate_half(q) * sin4
    k = k * cos4 + _ref_rotate_half(k) * sin4
    k = jnp.repeat(k, n_rep, axis=1)
    v = jnp.repeat(v, n_rep, axis=1)
    scores = jnp.einsum('bhqd,bhkd->bhqk', q, k) / math.sqrt(D) + mask[:, None]
    p = jax.nn.softmax(scores, axis=-1)
    o = jnp.einsum('bhqk,bhkd->bhqd', p, v)
    o = o.transpose(0, 2, 1, 3).reshape(B, S, NUM_HEADS * D) @ lp['wo']
    h2 = h + o
    hn = _ref_rmsnorm(h2, lp['ln2'])
    g = hn @ lp['wg']
    u = hn @ lp['wu']
    gelu = 0.5 * g * (1.0 + jnp.tanh(GELU_C * (g + 0.044715 * g ** 3)))
    return h2 + (gelu * u) @ lp['wd']


def ref_forward(inputs_embeds, mask, position_ids, params):
    cos, sin = rope_cos_sin(position_ids, HEAD_DIM, ROPE_THETA)
    h = inputs_embeds * jnp.float32(HIDDEN ** 0.5)
    for lp in params['layers']:
        h = _ref_layer(h, mask, cos, sin, lp)
    return _ref_rmsnorm(h, params['final_ln'])


# ---------------- main ----------------
if __name__ == "__main__":
    key = jax.random.PRNGKey(0)
    pkey, xkey = jax.random.split(key)

    params = init_params(pkey)
    inputs_embeds = jax.random.normal(xkey, (BATCH, SEQ, HIDDEN), jnp.float32)
    position_ids = jnp.broadcast_to(
        jnp.arange(SEQ, dtype=jnp.int32)[None, :], (BATCH, SEQ))

    # causal additive attention mask (0 keep / large negative masked)
    causal = jnp.tril(jnp.ones((SEQ, SEQ), jnp.float32))
    attention_mask = jnp.where(causal == 1.0, 0.0, MASK_NEG)
    attention_mask = jnp.broadcast_to(attention_mask[None], (BATCH, SEQ, SEQ))

    out = gemma_model_forward(inputs_embeds, attention_mask, position_ids, params)
    out = jax.block_until_ready(out)

    ref = ref_forward(inputs_embeds, attention_mask, position_ids, params)
    np.testing.assert_allclose(np.asarray(out), np.asarray(ref),
                               rtol=1e-2, atol=1e-2)

    print("KERNEL_OK")
</pallas_src>

<mosaic_0001>
module attributes {stable_mosaic.version = 11 : i64} {
  func.func @gemma_kernel(%arg0: i32, %arg1: i32, %arg2: memref<1x8x32xf32, #tpu.memory_space<vmem>>, %arg3: memref<1x16x8xf32, #tpu.memory_space<vmem>>, %arg4: memref<1x8x64xf32, #tpu.memory_space<vmem>>, %arg5: memref<1x8x64xf32, #tpu.memory_space<vmem>>, %arg6: memref<1x8x32xf32, #tpu.memory_space<vmem>>, %arg7: memref<1x8x32xf32, #tpu.memory_space<vmem>>, %arg8: memref<1x32x224xbf16, #tpu.memory_space<vmem>>, %arg9: memref<1x64x32xbf16, #tpu.memory_space<vmem>>, %arg10: memref<1x32x128xbf16, #tpu.memory_space<vmem>>, %arg11: memref<1x64x32xbf16, #tpu.memory_space<vmem>>, %arg12: memref<1x1x32xf32, #tpu.memory_space<vmem>>, %arg13: memref<1x1x32xf32, #tpu.memory_space<vmem>>, %arg14: memref<1x32xf32, #tpu.memory_space<vmem>>, %arg15: memref<1x8x32xf32, #tpu.memory_space<vmem>>, %arg16: memref<8x32xf32, #tpu.memory_space<vmem>>) attributes {dimension_semantics = [#tpu.dimension_semantics<parallel>, #tpu.dimension_semantics<arbitrary>], iteration_bounds = array<i64: 2, 2>, scalar_prefetch = 0 : i64, scratch_operands = 1 : i64, tpu.core_type = #tpu.core_type<tc>, window_params = [{transform_indices = @transform_0, window_bounds = array<i64: 1, 8, 32>}, {transform_indices = @transform_1, window_bounds = array<i64: 1, 16, 8>}, {transform_indices = @transform_2, window_bounds = array<i64: 1, 8, 64>}, {transform_indices = @transform_3, window_bounds = array<i64: 1, 8, 64>}, {transform_indices = @transform_4, window_bounds = array<i64: 1, 8, 32>}, {transform_indices = @transform_5, window_bounds = array<i64: 1, 8, 32>}, {transform_indices = @transform_6, window_bounds = array<i64: 1, 32, 224>}, {transform_indices = @transform_7, window_bounds = array<i64: 1, 64, 32>}, {transform_indices = @transform_8, window_bounds = array<i64: 1, 32, 128>}, {transform_indices = @transform_9, window_bounds = array<i64: 1, 64, 32>}, {transform_indices = @transform_10, window_bounds = array<i64: 1, 1, 32>}, {transform_indices = @transform_11, window_bounds = array<i64: 1, 1, 32>}, {pipeline_mode = #tpu.pipeline_mode<synchronous>, transform_indices = @transform_12, window_bounds = array<i64: 1, 32>}, {transform_indices = @transform_13, window_bounds = array<i64: 1, 8, 32>}]} {
    %c0_i32 = arith.constant 0 : i32
    %0 = arith.cmpi eq, %arg1, %c0_i32 : i32
    %1 = arith.extui %0 : i1 to i32
    %c0_i32_0 = arith.constant 0 : i32
    %2 = arith.cmpi ne, %1, %c0_i32_0 : i32
    scf.if %2 {
      %c0_57 = arith.constant 0 : index
      %c0_58 = arith.constant 0 : index
      %c0_59 = arith.constant 0 : index
      %142 = vector.load %arg2[%c0_57, %c0_58, %c0_59] : memref<1x8x32xf32, #tpu.memory_space<vmem>>, vector<1x8x32xf32>
      %143 = vector.shape_cast %142 : vector<1x8x32xf32> to vector<8x32xf32>
      %cst_60 = arith.constant 5.65685415 : f32
      %144 = vector.broadcast %cst_60 : f32 to vector<8x32xf32>
      %145 = arith.mulf %143, %144 : vector<8x32xf32>
      %c0_61 = arith.constant 0 : index
      %c0_62 = arith.constant 0 : index
      %146 = vector.load %arg16[%c0_61, %c0_62] : memref<8x32xf32, #tpu.memory_space<vmem>>, vector<8x32xf32>
      tpu.vector_store %arg16[%c0_61, %c0_62], %145 {strides = array<i32>} : memref<8x32xf32, #tpu.memory_space<vmem>>, vector<8x32xf32>,
    } else {
    }
    %c0 = arith.constant 0 : index
    %c0_1 = arith.constant 0 : index
    %3 = vector.load %arg16[%c0, %c0_1] : memref<8x32xf32, #tpu.memory_space<vmem>>, vector<8x32xf32>
    %c0_2 = arith.constant 0 : index
    %c0_3 = arith.constant 0 : index
    %c0_4 = arith.constant 0 : index
    %4 = vector.load %arg12[%c0_2, %c0_3, %c0_4] : memref<1x1x32xf32, #tpu.memory_space<vmem>>, vector<1x1x32xf32>
    %5 = vector.shape_cast %4 : vector<1x1x32xf32> to vector<1x32xf32>
    %6 = arith.mulf %3, %3 : vector<8x32xf32>
    %cst = arith.constant dense<0.000000e+00> : vector<8xf32>
    %7 = vector.multi_reduction <add>, %6, %cst [1] : vector<8x32xf32> to vector<8xf32>
    %8 = vector.shape_cast %7 : vector<8xf32> to vector<8x1xf32>
    %cst_5 = arith.constant 3.200000e+01 : f32
    %9 = vector.broadcast %cst_5 : f32 to vector<8x1xf32>
    %10 = arith.divf %8, %9 : vector<8x1xf32>
    %cst_6 = arith.constant 9.99999997E-7 : f32
    %11 = vector.broadcast %cst_6 : f32 to vector<8x1xf32>
    %12 = arith.addf %10, %11 : vector<8x1xf32>
    %13 = math.rsqrt %12 : vector<8x1xf32>
    %14 = vector.broadcast %13 : vector<8x1xf32> to vector<8x32xf32>
    %15 = arith.mulf %3, %14 : vector<8x32xf32>
    %cst_7 = arith.constant 1.000000e+00 : f32
    %16 = vector.broadcast %cst_7 : f32 to vector<1x32xf32>
    %17 = arith.addf %16, %5 : vector<1x32xf32>
    %18 = vector.broadcast %17 : vector<1x32xf32> to vector<8x32xf32>
    %19 = arith.mulf %15, %18 : vector<8x32xf32>
    %20 = arith.truncf %19 : vector<8x32xf32> to vector<8x32xbf16>
    %c0_8 = arith.constant 0 : index
    %c0_9 = arith.constant 0 : index
    %c0_10 = arith.constant 0 : index
    %21 = vector.load %arg8[%c0_8, %c0_9, %c0_10] : memref<1x32x224xbf16, #tpu.memory_space<vmem>>, vector<1x32x224xbf16>
    %22 = vector.shape_cast %21 : vector<1x32x224xbf16> to vector<32x224xbf16>
    %cst_11 = arith.constant dense<0.000000e+00> : vector<8x224xf32>
    %23 = tpu.matmul %20, %22, %cst_11 {dimension_numbers = #tpu.dot_dimension_numbers<[1], [0], [0], [1], [0, 0, 1, 1], [], []>} : vector<8x32xbf16>, vector<32x224xbf16>, vector<8x224xf32> -> vector<8x224xf32>
    %24 = vector.extract_strided_slice %23 {offsets = [0, 0], sizes = [8, 64], strides = [1, 1]} : vector<8x224xf32> to vector<8x64xf32>
    %25 = vector.extract_strided_slice %23 {offsets = [0, 64], sizes = [8, 32], strides = [1, 1]} : vector<8x224xf32> to vector<8x32xf32>
    %26 = vector.extract_strided_slice %23 {offsets = [0, 96], sizes = [8, 32], strides = [1, 1]} : vector<8x224xf32> to vector<8x32xf32>
    %27 = vector.extract_strided_slice %23 {offsets = [0, 128], sizes = [8, 64], strides = [1, 1]} : vector<8x224xf32> to vector<8x64xf32>
    %28 = vector.extract_strided_slice %23 {offsets = [0, 192], sizes = [8, 32], strides = [1, 1]} : vector<8x224xf32> to vector<8x32xf32>
    %c0_12 = arith.constant 0 : index
    %c0_13 = arith.constant 0 : index
    %c0_14 = arith.constant 0 : index
    %29 = vector.load %arg4[%c0_12, %c0_13, %c0_14] : memref<1x8x64xf32, #tpu.memory_space<vmem>>, vector<1x8x64xf32>
    %30 = vector.shape_cast %29 : vector<1x8x64xf32> to vector<8x64xf32>
    %31 = arith.mulf %24, %30 : vector<8x64xf32>
    %c0_15 = arith.constant 0 : index
    %c0_16 = arith.constant 0 : index
    %c0_17 = arith.constant 0 : index
    %32 = vector.load %arg5[%c0_15, %c0_16, %c0_17] : memref<1x8x64xf32, #tpu.memory_space<vmem>>, vector<1x8x64xf32>
    %33 = vector.shape_cast %32 : vector<1x8x64xf32> to vector<8x64xf32>
    %34 = arith.mulf %27, %33 : vector<8x64xf32>
    %35 = arith.addf %31, %34 : vector<8x64xf32>
    %c0_18 = arith.constant 0 : index
    %c0_19 = arith.constant 0 : index
    %c0_20 = arith.constant 0 : index
    %36 = vector.load %arg6[%c0_18, %c0_19, %c0_20] : memref<1x8x32xf32, #tpu.memory_space<vmem>>, vector<1x8x32xf32>
    %37 = vector.shape_cast %36 : vector<1x8x32xf32> to vector<8x32xf32>
    %38 = arith.mulf %25, %37 : vector<8x32xf32>
    %c0_21 = arith.constant 0 : index
    %c0_22 = arith.constant 0 : index
    %c0_23 = arith.constant 0 : index
    %39 = vector.load %arg7[%c0_21, %c0_22, %c0_23] : memref<1x8x32xf32, #tpu.memory_space<vmem>>, vector<1x8x32xf32>
    %40 = vector.shape_cast %39 : vector<1x8x32xf32> to vector<8x32xf32>
    %41 = arith.mulf %28, %40 : vector<8x32xf32>
    %42 = arith.addf %38, %41 : vector<8x32xf32>
    %43 = vector.extract_strided_slice %35 {offsets = [0, 0], sizes = [8, 16], strides = [1, 1]} : vector<8x64xf32> to vector<8x16xf32>
    %44 = vector.extract_strided_slice %35 {offsets = [0, 16], sizes = [8, 16], strides = [1, 1]} : vector<8x64xf32> to vector<8x16xf32>
    %45 = tpu.concatenate %43, %44 in 0 : vector<8x16xf32>, vector<8x16xf32> -> vector<16x16xf32>
    %46 = vector.extract_strided_slice %35 {offsets = [0, 32], sizes = [8, 16], strides = [1, 1]} : vector<8x64xf32> to vector<8x16xf32>
    %47 = vector.extract_strided_slice %35 {offsets = [0, 48], sizes = [8, 16], strides = [1, 1]} : vector<8x64xf32> to vector<8x16xf32>
    %48 = tpu.concatenate %46, %47 in 0 : vector<8x16xf32>, vector<8x16xf32> -> vector<16x16xf32>
    %49 = vector.shape_cast %45 : vector<16x16xf32> to vector<1x16x16xf32>
    %50 = vector.shape_cast %48 : vector<16x16xf32> to vector<1x16x16xf32>
    %51 = tpu.concatenate %49, %50 in 0 : vector<1x16x16xf32>, vector<1x16x16xf32> -> vector<2x16x16xf32>
    %52 = vector.extract_strided_slice %42 {offsets = [0, 0], sizes = [8, 16], strides = [1, 1]} : vector<8x32xf32> to vector<8x16xf32>
    %53 = vector.extract_strided_slice %42 {offsets = [0, 16], sizes = [8, 16], strides = [1, 1]} : vector<8x32xf32> to vector<8x16xf32>
    %54 = vector.shape_cast %52 : vector<8x16xf32> to vector<1x8x16xf32>
    %55 = vector.shape_cast %53 : vector<8x16xf32> to vector<1x8x16xf32>
    %56 = tpu.concatenate %54, %55 in 0 : vector<1x8x16xf32>, vector<1x8x16xf32> -> vector<2x8x16xf32>
    %57 = vector.extract_strided_slice %26 {offsets = [0, 0], sizes = [8, 16], strides = [1, 1]} : vector<8x32xf32> to vector<8x16xf32>
    %58 = vector.extract_strided_slice %26 {offsets = [0, 16], sizes = [8, 16], strides = [1, 1]} : vector<8x32xf32> to vector<8x16xf32>
    %59 = vector.shape_cast %57 : vector<8x16xf32> to vector<1x8x16xf32>
    %60 = vector.shape_cast %58 : vector<8x16xf32> to vector<1x8x16xf32>
    %61 = tpu.concatenate %59, %60 in 0 : vector<1x8x16xf32>, vector<1x8x16xf32> -> vector<2x8x16xf32>
    %62 = arith.truncf %51 : vector<2x16x16xf32> to vector<2x16x16xbf16>
    %63 = arith.truncf %56 : vector<2x8x16xf32> to vector<2x8x16xbf16>
    "tpu.trace_start"() <{level = 10 : i32, message = "gqd,gkd->gqk"}> : () -> ()
    %cst_24 = arith.constant dense<0.000000e+00> : vector<2x16x8xf32>
    %64 = tpu.matmul %62, %63, %cst_24 {dimension_numbers = #tpu.dot_dimension_numbers<[2], [2], [1], [1], [0, 0, 0, 1, 1, 1], [0], [0]>} : vector<2x16x16xbf16>, vector<2x8x16xbf16>, vector<2x16x8xf32> -> vector<2x16x8xf32>
    "tpu.trace_stop"() : () -> ()
    %c0_25 = arith.constant 0 : index
    %c0_26 = arith.constant 0 : index
    %c0_27 = arith.constant 0 : index
    %65 = vector.load %arg3[%c0_25, %c0_26, %c0_27] : memref<1x16x8xf32, #tpu.memory_space<vmem>>, vector<1x16x8xf32>
    %66 = vector.shape_cast %65 : vector<1x16x8xf32> to vector<16x8xf32>
    %67 = vector.shape_cast %66 : vector<16x8xf32> to vector<1x16x8xf32>
    %68 = vector.broadcast %67 : vector<1x16x8xf32> to vector<2x16x8xf32>
    %69 = arith.addf %64, %68 : vector<2x16x8xf32>
    %cst_28 = arith.constant dense<0xFF800000> : vector<2x16xf32>
    %70 = vector.multi_reduction <maximumf>, %69, %cst_28 [2] : vector<2x16x8xf32> to vector<2x16xf32>
    %71 = vector.shape_cast %70 : vector<2x16xf32> to vector<2x16x1xf32>
    %72 = vector.broadcast %71 : vector<2x16x1xf32> to vector<2x16x8xf32>
    %73 = arith.subf %69, %72 : vector<2x16x8xf32>
    %74 = math.exp %73 : vector<2x16x8xf32>
    %cst_29 = arith.constant dense<0.000000e+00> : vector<2x16xf32>
    %75 = vector.multi_reduction <add>, %74, %cst_29 [2] : vector<2x16x8xf32> to vector<2x16xf32>
    %76 = vector.shape_cast %75 : vector<2x16xf32> to vector<2x16x1xf32>
    %77 = tpu.reciprocal %76 {approx = true} : vector<2x16x1xf32> -> vector<2x16x1xf32>
    %78 = vector.broadcast %77 : vector<2x16x1xf32> to vector<2x16x8xf32>
    %79 = arith.mulf %74, %78 : vector<2x16x8xf32>
    %80 = arith.truncf %79 : vector<2x16x8xf32> to vector<2x16x8xbf16>
    %81 = arith.truncf %61 : vector<2x8x16xf32> to vector<2x8x16xbf16>
    "tpu.trace_start"() <{level = 10 : i32, message = "gqk,gkd->gqd"}> : () -> ()
    %cst_30 = arith.constant dense<0.000000e+00> : vector<2x16x16xf32>
    %82 = tpu.matmul %80, %81, %cst_30 {dimension_numbers = #tpu.dot_dimension_numbers<[2], [1], [1], [2], [0, 0, 0, 1, 1, 2], [0], [0]>} : vector<2x16x8xbf16>, vector<2x8x16xbf16>, vector<2x16x16xf32> -> vector<2x16x16xf32>
    "tpu.trace_stop"() : () -> ()
    %83 = vector.extract_strided_slice %82 {offsets = [0, 0, 0], sizes = [1, 8, 16], strides = [1, 1, 1]} : vector<2x16x16xf32> to vector<1x8x16xf32>
    %84 = vector.shape_cast %83 : vector<1x8x16xf32> to vector<8x16xf32>
    %85 = vector.extract_strided_slice %82 {offsets = [0, 8, 0], sizes = [1, 8, 16], strides = [1, 1, 1]} : vector<2x16x16xf32> to vector<1x8x16xf32>
    %86 = vector.shape_cast %85 : vector<1x8x16xf32> to vector<8x16xf32>
    %87 = vector.extract_strided_slice %82 {offsets = [1, 0, 0], sizes = [1, 8, 16], strides = [1, 1, 1]} : vector<2x16x16xf32> to vector<1x8x16xf32>
    %88 = vector.shape_cast %87 : vector<1x8x16xf32> to vector<8x16xf32>
    %89 = vector.extract_strided_slice %82 {offsets = [1, 8, 0], sizes = [1, 8, 16], strides = [1, 1, 1]} : vector<2x16x16xf32> to vector<1x8x16xf32>
    %90 = vector.shape_cast %89 : vector<1x8x16xf32> to vector<8x16xf32>
    %91 = tpu.concatenate %84, %86, %88, %90 in 1 : vector<8x16xf32>, vector<8x16xf32>, vector<8x16xf32>, vector<8x16xf32> -> vector<8x64xf32>
    %92 = arith.truncf %91 : vector<8x64xf32> to vector<8x64xbf16>
    %c0_31 = arith.constant 0 : index
    %c0_32 = arith.constant 0 : index
    %c0_33 = arith.constant 0 : index
    %93 = vector.load %arg9[%c0_31, %c0_32, %c0_33] : memref<1x64x32xbf16, #tpu.memory_space<vmem>>, vector<1x64x32xbf16>
    %94 = vector.shape_cast %93 : vector<1x64x32xbf16> to vector<64x32xbf16>
    %cst_34 = arith.constant dense<0.000000e+00> : vector<8x32xf32>
    %95 = tpu.matmul %92, %94, %cst_34 {dimension_numbers = #tpu.dot_dimension_numbers<[1], [0], [0], [1], [0, 0, 1, 1], [], []>} : vector<8x64xbf16>, vector<64x32xbf16>, vector<8x32xf32> -> vector<8x32xf32>
    %96 = arith.addf %3, %95 : vector<8x32xf32>
    %c0_35 = arith.constant 0 : index
    %c0_36 = arith.constant 0 : index
    %c0_37 = arith.constant 0 : index
    %97 = vector.load %arg13[%c0_35, %c0_36, %c0_37] : memref<1x1x32xf32, #tpu.memory_space<vmem>>, vector<1x1x32xf32>
    %98 = vector.shape_cast %97 : vector<1x1x32xf32> to vector<1x32xf32>
    %99 = arith.mulf %96, %96 : vector<8x32xf32>
    %cst_38 = arith.constant dense<0.000000e+00> : vector<8xf32>
    %100 = vector.multi_reduction <add>, %99, %cst_38 [1] : vector<8x32xf32> to vector<8xf32>
    %101 = vector.shape_cast %100 : vector<8xf32> to vector<8x1xf32>
    %cst_39 = arith.constant 3.200000e+01 : f32
    %102 = vector.broadcast %cst_39 : f32 to vector<8x1xf32>
    %103 = arith.divf %101, %102 : vector<8x1xf32>
    %cst_40 = arith.constant 9.99999997E-7 : f32
    %104 = vector.broadcast %cst_40 : f32 to vector<8x1xf32>
    %105 = arith.addf %103, %104 : vector<8x1xf32>
    %106 = math.rsqrt %105 : vector<8x1xf32>
    %107 = vector.broadcast %106 : vector<8x1xf32> to vector<8x32xf32>
    %108 = arith.mulf %96, %107 : vector<8x32xf32>
    %cst_41 = arith.constant 1.000000e+00 : f32
    %109 = vector.broadcast %cst_41 : f32 to vector<1x32xf32>
    %110 = arith.addf %109, %98 : vector<1x32xf32>
    %111 = vector.broadcast %110 : vector<1x32xf32> to vector<8x32xf32>
    %112 = arith.mulf %108, %111 : vector<8x32xf32>
    %113 = arith.truncf %112 : vector<8x32xf32> to vector<8x32xbf16>
    %c0_42 = arith.constant 0 : index
    %c0_43 = arith.constant 0 : index
    %c0_44 = arith.constant 0 : index
    %114 = vector.load %arg10[%c0_42, %c0_43, %c0_44] : memref<1x32x128xbf16, #tpu.memory_space<vmem>>, vector<1x32x128xbf16>
    %115 = vector.shape_cast %114 : vector<1x32x128xbf16> to vector<32x128xbf16>
    %cst_45 = arith.constant dense<0.000000e+00> : vector<8x128xf32>
    %116 = tpu.matmul %113, %115, %cst_45 {dimension_numbers = #tpu.dot_dimension_numbers<[1], [0], [0], [1], [0, 0, 1, 1], [], []>} : vector<8x32xbf16>, vector<32x128xbf16>, vector<8x128xf32> -> vector<8x128xf32>
    %117 = vector.extract_strided_slice %116 {offsets = [0, 0], sizes = [8, 64], strides = [1, 1]} : vector<8x128xf32> to vector<8x64xf32>
    %118 = vector.extract_strided_slice %116 {offsets = [0, 64], sizes = [8, 64], strides = [1, 1]} : vector<8x128xf32> to vector<8x64xf32>
    %cst_46 = arith.constant 5.000000e-01 : f32
    %119 = vector.broadcast %cst_46 : f32 to vector<8x64xf32>
    %120 = arith.mulf %119, %117 : vector<8x64xf32>
    %cst_47 = arith.constant 4.471500e-02 : f32
    %121 = vector.broadcast %cst_47 : f32 to vector<8x64xf32>
    %122 = arith.mulf %121, %117 : vector<8x64xf32>
    %123 = arith.mulf %122, %117 : vector<8x64xf32>
    %124 = arith.mulf %123, %117 : vector<8x64xf32>
    %125 = arith.addf %117, %124 : vector<8x64xf32>
    %cst_48 = arith.constant 0.797884583 : f32
    %126 = vector.broadcast %cst_48 : f32 to vector<8x64xf32>
    %127 = arith.mulf %126, %125 : vector<8x64xf32>
    %128 = math.tanh %127 : vector<8x64xf32>
    %cst_49 = arith.constant 1.000000e+00 : f32
    %129 = vector.broadcast %cst_49 : f32 to vector<8x64xf32>
    %130 = arith.addf %129, %128 : vector<8x64xf32>
    %131 = arith.mulf %120, %130 : vector<8x64xf32>
    %132 = arith.mulf %131, %118 : vector<8x64xf32>
    %133 = arith.truncf %132 : vector<8x64xf32> to vector<8x64xbf16>
    %c0_50 = arith.constant 0 : index
    %c0_51 = arith.constant 0 : index
    %c0_52 = arith.constant 0 : index
    %134 = vector.load %arg11[%c0_50, %c0_51, %c0_52] : memref<1x64x32xbf16, #tpu.memory_space<vmem>>, vector<1x64x32xbf16>
    %135 = vector.shape_cast %134 : vector<1x64x32xbf16> to vector<64x32xbf16>
    %cst_53 = arith.constant dense<0.000000e+00> : vector<8x32xf32>
    %136 = tpu.matmul %133, %135, %cst_53 {dimension_numbers = #tpu.dot_dimension_numbers<[1], [0], [0], [1], [0, 0, 1, 1], [], []>} : vector<8x64xbf16>, vector<64x32xbf16>, vector<8x32xf32> -> vector<8x32xf32>
    %137 = arith.addf %96, %136 : vector<8x32xf32>
    %c0_54 = arith.constant 0 : index
    %c0_55 = arith.constant 0 : index
    %138 = vector.load %arg16[%c0_54, %c0_55] : memref<8x32xf32, #tpu.memory_space<vmem>>, vector<8x32xf32>
    tpu.vector_store %arg16[%c0_54, %c0_55], %137 {strides = array<i32>} : memref<8x32xf32, #tpu.memory_space<vmem>>, vector<8x32xf32>,
    %c1_i32 = arith.constant 1 : i32
    %139 = arith.cmpi eq, %arg1, %c1_i32 : i32
    %140 = arith.extui %139 : i1 to i32
    %c0_i32_56 = arith.constant 0 : i32
    %141 = arith.cmpi ne, %140, %c0_i32_56 : i32
    scf.if %141 {
      %c0_57 = arith.constant 0 : index
      %c0_58 = arith.constant 0 : index
      %142 = vector.load %arg14[%c0_57, %c0_58] : memref<1x32xf32, #tpu.memory_space<vmem>>, vector<1x32xf32>
      %143 = arith.mulf %137, %137 : vector<8x32xf32>
      %cst_59 = arith.constant dense<0.000000e+00> : vector<8xf32>
      %144 = vector.multi_reduction <add>, %143, %cst_59 [1] : vector<8x32xf32> to vector<8xf32>
      %145 = vector.shape_cast %144 : vector<8xf32> to vector<8x1xf32>
      %cst_60 = arith.constant 3.200000e+01 : f32
      %146 = vector.broadcast %cst_60 : f32 to vector<8x1xf32>
      %147 = arith.divf %145, %146 : vector<8x1xf32>
      %cst_61 = arith.constant 9.99999997E-7 : f32
      %148 = vector.broadcast %cst_61 : f32 to vector<8x1xf32>
      %149 = arith.addf %147, %148 : vector<8x1xf32>
      %150 = math.rsqrt %149 : vector<8x1xf32>
      %151 = vector.broadcast %150 : vector<8x1xf32> to vector<8x32xf32>
      %152 = arith.mulf %137, %151 : vector<8x32xf32>
      %cst_62 = arith.constant 1.000000e+00 : f32
      %153 = vector.broadcast %cst_62 : f32 to vector<1x32xf32>
      %154 = arith.addf %153, %142 : vector<1x32xf32>
      %155 = vector.broadcast %154 : vector<1x32xf32> to vector<8x32xf32>
      %156 = arith.mulf %152, %155 : vector<8x32xf32>
      %c0_63 = arith.constant 0 : index
      %c0_64 = arith.constant 0 : index
      %c0_65 = arith.constant 0 : index
      %157 = vector.load %arg15[%c0_63, %c0_64, %c0_65] : memref<1x8x32xf32, #tpu.memory_space<vmem>>, vector<1x8x32xf32>
      %158 = vector.shape_cast %157 : vector<1x8x32xf32> to vector<8x32xf32>
      %159 = vector.shape_cast %156 : vector<8x32xf32> to vector<1x8x32xf32>
      tpu.vector_store %arg15[%c0_63, %c0_64, %c0_65], %159 {strides = array<i32>} : memref<1x8x32xf32, #tpu.memory_space<vmem>>, vector<1x8x32xf32>,
    } else {
    }
    return
  }
  func.func @transform_0(%arg0: i32, %arg1: i32) -> (i32, i32, i32) {
    %c0_i32 = arith.constant 0 : i32
    %c0_i32_0 = arith.constant 0 : i32
    %c0_i32_1 = arith.constant 0 : i32
    return %arg0, %c0_i32, %c0_i32_0 : i32, i32, i32
  }
  func.func @transform_1(%arg0: i32, %arg1: i32) -> (i32, i32, i32) {
    %c0_i32 = arith.constant 0 : i32
    %c0_i32_0 = arith.constant 0 : i32
    %c0_i32_1 = arith.constant 0 : i32
    return %arg0, %c0_i32, %c0_i32_0 : i32, i32, i32
  }
  func.func @transform_2(%arg0: i32, %arg1: i32) -> (i32, i32, i32) {
    %c0_i32 = arith.constant 0 : i32
    %c0_i32_0 = arith.constant 0 : i32
    %c0_i32_1 = arith.constant 0 : i32
    return %arg0, %c0_i32, %c0_i32_0 : i32, i32, i32
  }
  func.func @transform_3(%arg0: i32, %arg1: i32) -> (i32, i32, i32) {
    %c0_i32 = arith.constant 0 : i32
    %c0_i32_0 = arith.constant 0 : i32
    %c0_i32_1 = arith.constant 0 : i32
    return %arg0, %c0_i32, %c0_i32_0 : i32, i32, i32
  }
  func.func @transform_4(%arg0: i32, %arg1: i32) -> (i32, i32, i32) {
    %c0_i32 = arith.constant 0 : i32
    %c0_i32_0 = arith.constant 0 : i32
    %c0_i32_1 = arith.constant 0 : i32
    return %arg0, %c0_i32, %c0_i32_0 : i32, i32, i32
  }
  func.func @transform_5(%arg0: i32, %arg1: i32) -> (i32, i32, i32) {
    %c0_i32 = arith.constant 0 : i32
    %c0_i32_0 = arith.constant 0 : i32
    %c0_i32_1 = arith.constant 0 : i32
    return %arg0, %c0_i32, %c0_i32_0 : i32, i32, i32
  }
  func.func @transform_6(%arg0: i32, %arg1: i32) -> (i32, i32, i32) {
    %c0_i32 = arith.constant 0 : i32
    %c0_i32_0 = arith.constant 0 : i32
    %c0_i32_1 = arith.constant 0 : i32
    return %arg1, %c0_i32, %c0_i32_0 : i32, i32, i32
  }
  func.func @transform_7(%arg0: i32, %arg1: i32) -> (i32, i32, i32) {
    %c0_i32 = arith.constant 0 : i32
    %c0_i32_0 = arith.constant 0 : i32
    %c0_i32_1 = arith.constant 0 : i32
    return %arg1, %c0_i32, %c0_i32_0 : i32, i32, i32
  }
  func.func @transform_8(%arg0: i32, %arg1: i32) -> (i32, i32, i32) {
    %c0_i32 = arith.constant 0 : i32
    %c0_i32_0 = arith.constant 0 : i32
    %c0_i32_1 = arith.constant 0 : i32
    return %arg1, %c0_i32, %c0_i32_0 : i32, i32, i32
  }
  func.func @transform_9(%arg0: i32, %arg1: i32) -> (i32, i32, i32) {
    %c0_i32 = arith.constant 0 : i32
    %c0_i32_0 = arith.constant 0 : i32
    %c0_i32_1 = arith.constant 0 : i32
    return %arg1, %c0_i32, %c0_i32_0 : i32, i32, i32
  }
  func.func @transform_10(%arg0: i32, %arg1: i32) -> (i32, i32, i32) {
    %c0_i32 = arith.constant 0 : i32
    %c0_i32_0 = arith.constant 0 : i32
    %c0_i32_1 = arith.constant 0 : i32
    return %arg1, %c0_i32, %c0_i32_0 : i32, i32, i32
  }
  func.func @transform_11(%arg0: i32, %arg1: i32) -> (i32, i32, i32) {
    %c0_i32 = arith.constant 0 : i32
    %c0_i32_0 = arith.constant 0 : i32
    %c0_i32_1 = arith.constant 0 : i32
    return %arg1, %c0_i32, %c0_i32_0 : i32, i32, i32
  }
  func.func @transform_12(%arg0: i32, %arg1: i32) -> (i32, i32) {
    %c0_i32 = arith.constant 0 : i32
    %c0_i32_0 = arith.constant 0 : i32
    %c0_i32_1 = arith.constant 0 : i32
    return %c0_i32, %c0_i32_0 : i32, i32
  }
  func.func @transform_13(%arg0: i32, %arg1: i32) -> (i32, i32, i32) {
    %c0_i32 = arith.constant 0 : i32
    %c0_i32_0 = arith.constant 0 : i32
    %c0_i32_1 = arith.constant 0 : i32
    return %arg0, %c0_i32, %c0_i32_0 : i32, i32, i32
  }
}

</mosaic_0001>

<llo_original>
// kernel: tpu_custom_call.1
$region0: #{tpu_custom_call.1}
  #allocation0 [shape = 'u32[]', space=smem, size = 0x4, offset = 0x4, fixed_abs, tag = 'smem constant byte address 0x4 - core index']
  #allocation1 [shape = 'u32[72,128]{1,0:T(1,128)}', space=vmem, size = 0x9000, scoped, tag = 'internal scratch']
  #allocation2 [shape = 'f32[8,32]{1,0:T(8,128)}', space=vmem, size = 0x1000, scoped, tag = 'scratch operand']
  %s0 = inlined_call_operand.vmem [shape: f32[2,8,32], index: 0, kind: input, shape index: {}]
  %s1 = inlined_call_operand.vmem [shape: f32[2,16,8], index: 1, kind: input, shape index: {}]
  %s2 = inlined_call_operand.vmem [shape: f32[2,8,64], index: 2, kind: input, shape index: {}]
  %s3 = inlined_call_operand.vmem [shape: f32[2,8,64], index: 3, kind: input, shape index: {}]
  %s4 = inlined_call_operand.vmem [shape: f32[2,8,32], index: 4, kind: input, shape index: {}]
  %s5 = inlined_call_operand.vmem [shape: f32[2,8,32], index: 5, kind: input, shape index: {}]
  %s6 = inlined_call_operand.vmem [shape: bf16[2,32,224], index: 6, kind: input, shape index: {}]
  %s7 = inlined_call_operand.vmem [shape: bf16[2,64,32], index: 7, kind: input, shape index: {}]
  %s8 = inlined_call_operand.vmem [shape: bf16[2,32,128], index: 8, kind: input, shape index: {}]
  %s9 = inlined_call_operand.vmem [shape: bf16[2,64,32], index: 9, kind: input, shape index: {}]
  %s10 = inlined_call_operand.vmem [shape: f32[2,1,32], index: 10, kind: input, shape index: {}]
  %s11 = inlined_call_operand.vmem [shape: f32[2,1,32], index: 11, kind: input, shape index: {}]
  %s12 = inlined_call_operand.vmem [shape: f32[1,32], index: 12, kind: input, shape index: {}]
  %s13 = inlined_call_operand.hbm [shape: f32[2,8,32], index: 13, kind: output, shape index: {}]
  %s14 = sld [smem:[#allocation0]]
  $region93: #{tpu_custom_call.1} parent=0
    _
  %s16 = ssub.s32 1, %s14
  %s17 = scalar_select 0, %s16, %s14
  $region1: #{tpu_custom_call.1} parent=0
    #allocation3 [shape = 'u8[8192]{0}', space=vmem, size = 0x2000, scoped, tag = 'output window, operand 0']
    #allocation4 [shape = 's32[2]{0}', space=sflag, size = 0x8, scoped, tag = 'scoped memory for tpu_custom_call.1']
    %18 = vsyncpa [#allocation4], 0
    %s19 = scalar_lea.sflag [#allocation4], 1
    %20 = vsyncpa %s19, 0
    loop: start=0, step=1, limit=6
    $region2: #{tpu_custom_call.1} parent=1 // loop_pre_header
      _
    $region3: #{tpu_custom_call.1} parent=1 // loop_header
      %s22 = sphi 0, %s26
      %p23 = scmp.ge.s32.totalorder %s22, 6
      %s29 = sphi 0, %s41
      %s30 = sphi 0, %s37
      %s31 = sphi 0, %s29
      %s32 = sphi 0, %s30
      %s33 = sphi 0, %s31
      %s34 = sphi 0, %s32
      %s44 = sphi 0, %s46
      %s47 = sphi 0, %s44
      %s48 = sphi 0, %s47
      %s64 = sphi 0, %s48
      %s70 = sphi 0, %s72
      %s73 = sphi 0, %s70
      %s74 = sphi 0, %s73
      %s90 = sphi 0, %s74
      %s96 = sphi 0, %s98
      %s99 = sphi 0, %s96
      %s100 = sphi 0, %s99
      %s116 = sphi 0, %s100
      %s122 = sphi 0, %s124
      %s125 = sphi 0, %s122
      %s126 = sphi 0, %s125
      %s142 = sphi 0, %s126
      %s148 = sphi 0, %s150
      %s151 = sphi 0, %s148
      %s152 = sphi 0, %s151
      %s168 = sphi 0, %s152
      %s174 = sphi 0, %s176
      %s177 = sphi 0, %s174
      %s178 = sphi 0, %s177
      %s194 = sphi 0, %s178
      %s200 = sphi 0, %s202
      %s203 = sphi 0, %s200
      %s204 = sphi 0, %s203
      %s220 = sphi 0, %s204
      %s226 = sphi 0, %s228
      %s229 = sphi 0, %s226
      %s230 = sphi 0, %s229
      %s246 = sphi 0, %s230
      %s252 = sphi 0, %s254
      %s255 = sphi 0, %s252
      %s256 = sphi 0, %s255
      %s272 = sphi 0, %s256
      %s278 = sphi 0, %s280
      %s281 = sphi 0, %s278
      %s282 = sphi 0, %s281
      %s298 = sphi 0, %s282
      %s304 = sphi 0, %s306
      %s307 = sphi 0, %s304
      %s308 = sphi 0, %s307
      %s324 = sphi 0, %s308
      %s330 = sphi 0, %s332
      %s333 = sphi 0, %s330
      %s334 = sphi 0, %s333
      %s350 = sphi 0, %s334
      %s354 = sphi 0, %s354
      %s356 = sphi 0, %s354
      %s357 = sphi 0, %s356
      %s371 = sphi 0, %s357
      %s377 = sphi 0, %s379
      %s380 = sphi 0, %s377
      %s381 = sphi 0, %s380
      %s397 = sphi 0, %s381
    $region4: #{tpu_custom_call.1} parent=1 // loop_header_branch
      %25 = sbr.rel (%p23) target = $region8
    $region5: #{tpu_custom_call.1} parent=1 // loop_body
      %s27 = ssub.s32 %s22, 1
      %s28 = ssub.s32 %s22, 2
      %s35 = sadd.s32 1, %s30
      %p36 = scmp.ge.s32.totalorder %s35, 2
      %s37 = scalar_select %p36, 0, %s35
      %s38 = sadd.s32 1, %s29
      %s39 = scalar_select %p36, %s38, %s29
      %p40 = scmp.ge.s32.totalorder %s39, 2
      %s41 = scalar_select %p40, 0, %s39
      %s42 = ssub.s32 %s29, %s41
      %p43 = scmp.eq.s32.totalorder %s42, 0
      %s45 = sadd.s32 %s44, 1
      %s46 = scalar_select %p43, %s44, %s45
      %p49 = pneg %p43
      %p50 = scmp.eq.s32.totalorder %s22, 3
      %p51 = por %p49, %p50
      %p52 = scmp.ne.s32.totalorder %s44, %s47
      %p53 = scmp.eq.s32.totalorder %s22, 0
      %p54 = por %p52, %p53
      %p55 = scmp.ne.s32.totalorder %s44, %s47
      %p56 = scmp.eq.s32.totalorder %s27, 3
      %p57 = por %p55, %p56
      %p58 = scmp.ne.s32.totalorder %s47, %s48
      %p59 = scmp.eq.s32.totalorder %s27, 0
      %p60 = por %p58, %p59
      %p61 = scmp.ne.s32.totalorder %s47, %s48
      %p62 = scmp.eq.s32.totalorder %s28, 3
      %p63 = por %p61, %p62
      %p65 = scmp.ne.s32.totalorder %s48, %s64
      %p66 = scmp.eq.s32.totalorder %s28, 0
      %p67 = por %p65, %p66
      %s68 = ssub.s32 %s29, %s41
      %p69 = scmp.eq.s32.totalorder %s68, 0
      %s71 = sadd.s32 %s70, 1
      %s72 = scalar_select %p69, %s70, %s71
      %p75 = pneg %p69
      %p76 = scmp.eq.s32.totalorder %s22, 3
      %p77 = por %p75, %p76
      %p78 = scmp.ne.s32.totalorder %s70, %s73
      %p79 = scmp.eq.s32.totalorder %s22, 0
      %p80 = por %p78, %p79
      %p81 = scmp.ne.s32.totalorder %s70, %s73
      %p82 = scmp.eq.s32.totalorder %s27, 3
      %p83 = por %p81, %p82
      %p84 = scmp.ne.s32.totalorder %s73, %s74
      %p85 = scmp.eq.s32.totalorder %s27, 0
      %p86 = por %p84, %p85
      %p87 = scmp.ne.s32.totalorder %s73, %s74
      %p88 = scmp.eq.s32.totalorder %s28, 3
      %p89 = por %p87, %p88
      %p91 = scmp.ne.s32.totalorder %s74, %s90
      %p92 = scmp.eq.s32.totalorder %s28, 0
      %p93 = por %p91, %p92
      %s94 = ssub.s32 %s29, %s41
      %p95 = scmp.eq.s32.totalorder %s94, 0
      %s97 = sadd.s32 %s96, 1
      %s98 = scalar_select %p95, %s96, %s97
      %p101 = pneg %p95
      %p102 = scmp.eq.s32.totalorder %s22, 3
      %p103 = por %p101, %p102
      %p104 = scmp.ne.s32.totalorder %s96, %s99
      %p105 = scmp.eq.s32.totalorder %s22, 0
      %p106 = por %p104, %p105
      %p107 = scmp.ne.s32.totalorder %s96, %s99
      %p108 = scmp.eq.s32.totalorder %s27, 3
      %p109 = por %p107, %p108
      %p110 = scmp.ne.s32.totalorder %s99, %s100
      %p111 = scmp.eq.s32.totalorder %s27, 0
      %p112 = por %p110, %p111
      %p113 = scmp.ne.s32.totalorder %s99, %s100
      %p114 = scmp.eq.s32.totalorder %s28, 3
      %p115 = por %p113, %p114
      %p117 = scmp.ne.s32.totalorder %s100, %s116
      %p118 = scmp.eq.s32.totalorder %s28, 0
      %p119 = por %p117, %p118
      %s120 = ssub.s32 %s29, %s41
      %p121 = scmp.eq.s32.totalorder %s120, 0
      %s123 = sadd.s32 %s122, 1
      %s124 = scalar_select %p121, %s122, %s123
      %p127 = pneg %p121
      %p128 = scmp.eq.s32.totalorder %s22, 3
      %p129 = por %p127, %p128
      %p130 = scmp.ne.s32.totalorder %s122, %s125
      %p131 = scmp.eq.s32.totalorder %s22, 0
      %p132 = por %p130, %p131
      %p133 = scmp.ne.s32.totalorder %s122, %s125
      %p134 = scmp.eq.s32.totalorder %s27, 3
      %p135 = por %p133, %p134
      %p136 = scmp.ne.s32.totalorder %s125, %s126
      %p137 = scmp.eq.s32.totalorder %s27, 0
      %p138 = por %p136, %p137
      %p139 = scmp.ne.s32.totalorder %s125, %s126
      %p140 = scmp.eq.s32.totalorder %s28, 3
      %p141 = por %p139, %p140
      %p143 = scmp.ne.s32.totalorder %s126, %s142
      %p144 = scmp.eq.s32.totalorder %s28, 0
      %p145 = por %p143, %p144
      %s146 = ssub.s32 %s29, %s41
      %p147 = scmp.eq.s32.totalorder %s146, 0
      %s149 = sadd.s32 %s148, 1
      %s150 = scalar_select %p147, %s148, %s149
      %p153 = pneg %p147
      %p154 = scmp.eq.s32.totalorder %s22, 3
      %p155 = por %p153, %p154
      %p156 = scmp.ne.s32.totalorder %s148, %s151
      %p157 = scmp.eq.s32.totalorder %s22, 0
      %p158 = por %p156, %p157
      %p159 = scmp.ne.s32.totalorder %s148, %s151
      %p160 = scmp.eq.s32.totalorder %s27, 3
      %p161 = por %p159, %p160
      %p162 = scmp.ne.s32.totalorder %s151, %s152
      %p163 = scmp.eq.s32.totalorder %s27, 0
      %p164 = por %p162, %p163
      %p165 = scmp.ne.s32.totalorder %s151, %s152
      %p166 = scmp.eq.s32.totalorder %s28, 3
      %p167 = por %p165, %p166
      %p169 = scmp.ne.s32.totalorder %s152, %s168
      %p170 = scmp.eq.s32.totalorder %s28, 0
      %p171 = por %p169, %p170
      %s172 = ssub.s32 %s29, %s41
      %p173 = scmp.eq.s32.totalorder %s172, 0
      %s175 = sadd.s32 %s174, 1
      %s176 = scalar_select %p173, %s174, %s175
      %p179 = pneg %p173
      %p180 = scmp.eq.s32.totalorder %s22, 3
      %p181 = por %p179, %p180
      %p182 = scmp.ne.s32.totalorder %s174, %s177
      %p183 = scmp.eq.s32.totalorder %s22, 0
      %p184 = por %p182, %p183
      %p185 = scmp.ne.s32.totalorder %s174, %s177
      %p186 = scmp.eq.s32.totalorder %s27, 3
      %p187 = por %p185, %p186
      %p188 = scmp.ne.s32.totalorder %s177, %s178
      %p189 = scmp.eq.s32.totalorder %s27, 0
      %p190 = por %p188, %p189
      %p191 = scmp.ne.s32.totalorder %s177, %s178
      %p192 = scmp.eq.s32.totalorder %s28, 3
      %p193 = por %p191, %p192
      %p195 = scmp.ne.s32.totalorder %s178, %s194
      %p196 = scmp.eq.s32.totalorder %s28, 0
      %p197 = por %p195, %p196
      %s198 = ssub.s32 %s30, %s37
      %p199 = scmp.eq.s32.totalorder %s198, 0
      %s201 = sadd.s32 %s200, 1
      %s202 = scalar_select %p199, %s200, %s201
      %p205 = pneg %p199
      %p206 = scmp.eq.s32.totalorder %s22, 3
      %p207 = por %p205, %p206
      %p208 = scmp.ne.s32.totalorder %s200, %s203
      %p209 = scmp.eq.s32.totalorder %s22, 0
      %p210 = por %p208, %p209
      %p211 = scmp.ne.s32.totalorder %s200, %s203
      %p212 = scmp.eq.s32.totalorder %s27, 3
      %p213 = por %p211, %p212
      %p214 = scmp.ne.s32.totalorder %s203, %s204
      %p215 = scmp.eq.s32.totalorder %s27, 0
      %p216 = por %p214, %p215
      %p217 = scmp.ne.s32.totalorder %s203, %s204
      %p218 = scmp.eq.s32.totalorder %s28, 3
      %p219 = por %p217, %p218
      %p221 = scmp.ne.s32.totalorder %s204, %s220
      %p222 = scmp.eq.s32.totalorder %s28, 0
      %p223 = por %p221, %p222
      %s224 = ssub.s32 %s30, %s37
      %p225 = scmp.eq.s32.totalorder %s224, 0
      %s227 = sadd.s32 %s226, 1
      %s228 = scalar_select %p225, %s226, %s227
      %p231 = pneg %p225
      %p232 = scmp.eq.s32.totalorder %s22, 3
      %p233 = por %p231, %p232
      %p234 = scmp.ne.s32.totalorder %s226, %s229
      %p235 = scmp.eq.s32.totalorder %s22, 0
      %p236 = por %p234, %p235
      %p237 = scmp.ne.s32.totalorder %s226, %s229
      %p238 = scmp.eq.s32.totalorder %s27, 3
      %p239 = por %p237, %p238
      %p240 = scmp.ne.s32.totalorder %s229, %s230
      %p241 = scmp.eq.s32.totalorder %s27, 0
      %p242 = por %p240, %p241
      %p243 = scmp.ne.s32.totalorder %s229, %s230
      %p244 = scmp.eq.s32.totalorder %s28, 3
      %p245 = por %p243, %p244
      %p247 = scmp.ne.s32.totalorder %s230, %s246
      %p248 = scmp.eq.s32.totalorder %s28, 0
      %p249 = por %p247, %p248
      %s250 = ssub.s32 %s30, %s37
      %p251 = scmp.eq.s32.totalorder %s250, 0
      %s253 = sadd.s32 %s252, 1
      %s254 = scalar_select %p251, %s252, %s253
      %p257 = pneg %p251
      %p258 = scmp.eq.s32.totalorder %s22, 3
      %p259 = por %p257, %p258
      %p260 = scmp.ne.s32.totalorder %s252, %s255
      %p261 = scmp.eq.s32.totalorder %s22, 0
      %p262 = por %p260, %p261
      %p263 = scmp.ne.s32.totalorder %s252, %s255
      %p264 = scmp.eq.s32.totalorder %s27, 3
      %p265 = por %p263, %p264
      %p266 = scmp.ne.s32.totalorder %s255, %s256
      %p267 = scmp.eq.s32.totalorder %s27, 0
      %p268 = por %p266, %p267
      %p269 = scmp.ne.s32.totalorder %s255, %s256
      %p270 = scmp.eq.s32.totalorder %s28, 3
      %p271 = por %p269, %p270
      %p273 = scmp.ne.s32.totalorder %s256, %s272
      %p274 = scmp.eq.s32.totalorder %s28, 0
      %p275 = por %p273, %p274
      %s276 = ssub.s32 %s30, %s37
      %p277 = scmp.eq.s32.totalorder %s276, 0
      %s279 = sadd.s32 %s278, 1
      %s280 = scalar_select %p277, %s278, %s279
      %p283 = pneg %p277
      %p284 = scmp.eq.s32.totalorder %s22, 3
      %p285 = por %p283, %p284
      %p286 = scmp.ne.s32.totalorder %s278, %s281
      %p287 = scmp.eq.s32.totalorder %s22, 0
      %p288 = por %p286, %p287
      %p289 = scmp.ne.s32.totalorder %s278, %s281
      %p290 = scmp.eq.s32.totalorder %s27, 3
      %p291 = por %p289, %p290
      %p292 = scmp.ne.s32.totalorder %s281, %s282
      %p293 = scmp.eq.s32.totalorder %s27, 0
      %p294 = por %p292, %p293
      %p295 = scmp.ne.s32.totalorder %s281, %s282
      %p296 = scmp.eq.s32.totalorder %s28, 3
      %p297 = por %p295, %p296
      %p299 = scmp.ne.s32.totalorder %s282, %s298
      %p300 = scmp.eq.s32.totalorder %s28, 0
      %p301 = por %p299, %p300
      %s302 = ssub.s32 %s30, %s37
      %p303 = scmp.eq.s32.totalorder %s302, 0
      %s305 = sadd.s32 %s304, 1
      %s306 = scalar_select %p303, %s304, %s305
      %p309 = pneg %p303
      %p310 = scmp.eq.s32.totalorder %s22, 3
      %p311 = por %p309, %p310
      %p312 = scmp.ne.s32.totalorder %s304, %s307
      %p313 = scmp.eq.s32.totalorder %s22, 0
      %p314 = por %p312, %p313
      %p315 = scmp.ne.s32.totalorder %s304, %s307
      %p316 = scmp.eq.s32.totalorder %s27, 3
      %p317 = por %p315, %p316
      %p318 = scmp.ne.s32.totalorder %s307, %s308
      %p319 = scmp.eq.s32.totalorder %s27, 0
      %p320 = por %p318, %p319
      %p321 = scmp.ne.s32.totalorder %s307, %s308
      %p322 = scmp.eq.s32.totalorder %s28, 3
      %p323 = por %p321, %p322
      %p325 = scmp.ne.s32.totalorder %s308, %s324
      %p326 = scmp.eq.s32.totalorder %s28, 0
      %p327 = por %p325, %p326
      %s328 = ssub.s32 %s30, %s37
      %p329 = scmp.eq.s32.totalorder %s328, 0
      %s331 = sadd.s32 %s330, 1
      %s332 = scalar_select %p329, %s330, %s331
      %p335 = pneg %p329
      %p336 = scmp.eq.s32.totalorder %s22, 3
      %p337 = por %p335, %p336
      %p338 = scmp.ne.s32.totalorder %s330, %s333
      %p339 = scmp.eq.s32.totalorder %s22, 0
      %p340 = por %p338, %p339
      %p341 = scmp.ne.s32.totalorder %s330, %s333
      %p342 = scmp.eq.s32.totalorder %s27, 3
      %p343 = por %p341, %p342
      %p344 = scmp.ne.s32.totalorder %s333, %s334
      %p345 = scmp.eq.s32.totalorder %s27, 0
      %p346 = por %p344, %p345
      %p347 = scmp.ne.s32.totalorder %s333, %s334
      %p348 = scmp.eq.s32.totalorder %s28, 3
      %p349 = por %p347, %p348
      %p351 = scmp.ne.s32.totalorder %s334, %s350
      %p352 = scmp.eq.s32.totalorder %s28, 0
      %p353 = por %p351, %p352
      %s355 = sadd.s32 %s354, 1
      %p358 = scmp.eq.s32.totalorder %s22, 3
      %p359 = scmp.ne.s32.totalorder %s354, %s356
      %p360 = scmp.eq.s32.totalorder %s22, 0
      %p361 = por %p359, %p360
      %p362 = scmp.ne.s32.totalorder %s354, %s356
      %p363 = scmp.eq.s32.totalorder %s27, 3
      %p364 = por %p362, %p363
      %p365 = scmp.ne.s32.totalorder %s356, %s357
      %p366 = scmp.eq.s32.totalorder %s27, 0
      %p367 = por %p365, %p366
      %p368 = scmp.ne.s32.totalorder %s356, %s357
      %p369 = scmp.eq.s32.totalorder %s28, 3
      %p370 = por %p368, %p369
      %p372 = scmp.ne.s32.totalorder %s357, %s371
      %p373 = scmp.eq.s32.totalorder %s28, 0
      %p374 = por %p372, %p373
      %s375 = ssub.s32 %s29, %s41
      %p376 = scmp.eq.s32.totalorder %s375, 0
      %s378 = sadd.s32 %s377, 1
      %s379 = scalar_select %p376, %s377, %s378
      %p382 = pneg %p376
      %p383 = scmp.eq.s32.totalorder %s22, 3
      %p384 = por %p382, %p383
      %p385 = scmp.ne.s32.totalorder %s377, %s380
      %p386 = scmp.eq.s32.totalorder %s22, 0
      %p387 = por %p385, %p386
      %p388 = scmp.ne.s32.totalorder %s377, %s380
      %p389 = scmp.eq.s32.totalorder %s27, 3
      %p390 = por %p388, %p389
      %p391 = scmp.ne.s32.totalorder %s380, %s381
      %p392 = scmp.eq.s32.totalorder %s27, 0
      %p393 = por %p391, %p392
      %p394 = scmp.ne.s32.totalorder %s380, %s381
      %p395 = scmp.eq.s32.totalorder %s28, 3
      %p396 = por %p394, %p395
      %p398 = scmp.ne.s32.totalorder %s381, %s397
      %p399 = scmp.eq.s32.totalorder %s28, 0
      %p400 = por %p398, %p399
      %p401 = scmp.le.s32.totalorder 1, %s22
      %p402 = scmp.lt.s32.totalorder %s22, 5
      %p403 = pnand %p401, %p402
      %p404 = pneg %p403
      // Predicated region
      $region9: #{tpu_custom_call.1} parent=5 // pred_check
        _
      $region10: #{tpu_custom_call.1} parent=5 // pred_check_branch
        %406 = sbr.rel (%p403) target = $region12
      $region11: #{tpu_custom_call.1} parent=5 // pred_region
        %s407 = ssub.s32 %s22, 1
        // Predicated region
        $region13: #{tpu_custom_call.1} parent=11 // pred_check
          %p408 = pneg %p367
        $region14: #{tpu_custom_call.1} parent=11 // pred_check_branch
          %410 = sbr.rel (%p408) target = $region16
        $region15: #{tpu_custom_call.1} parent=11 // pred_region
          _
        $region16: #{tpu_custom_call.1} parent=11 // pred_fallthru
          _
      $region12: #{tpu_custom_call.1} parent=5 // pred_fallthru
        _
      %p411 = scmp.lt.s32.totalorder %s22, 4
      // Predicated region
      $region17: #{tpu_custom_call.1} parent=5 // pred_check
        %p412 = pneg %p411
      $region18: #{tpu_custom_call.1} parent=5 // pred_check_branch
        %414 = sbr.rel (%p412) target = $region20
      $region19: #{tpu_custom_call.1} parent=5 // pred_region
        // Predicated region
        $region21: #{tpu_custom_call.1} parent=19 // pred_check
          %p415 = pneg %p54
        $region22: #{tpu_custom_call.1} parent=19 // pred_check_branch
          %417 = sbr.rel (%p415) target = $region24
        $region23: #{tpu_custom_call.1} parent=19 // pred_region
          %p418 = scmp.lt.s32.totalorder %s29, 1
          %s419 = scalar_select %p418, %s29, 1
          %s420 = smul.addr %s419, 8
          %s421 = scalar_lea.vmem %s0, %s420
        $region24: #{tpu_custom_call.1} parent=19 // pred_fallthru
          _
        // Predicated region
        $region25: #{tpu_custom_call.1} parent=19 // pred_check
          %p422 = pneg %p80
        $region26: #{tpu_custom_call.1} parent=19 // pred_check_branch
          %424 = sbr.rel (%p422) target = $region28
        $region27: #{tpu_custom_call.1} parent=19 // pred_region
          %p425 = scmp.lt.s32.totalorder %s29, 1
          %s426 = scalar_select %p425, %s29, 1
          %s427 = smul.addr %s426, 2
          %s428 = smul.addr %s427, 8
          %s429 = scalar_lea.vmem %s1, %s428
        $region28: #{tpu_custom_call.1} parent=19 // pred_fallthru
          _
        // Predicated region
        $region29: #{tpu_custom_call.1} parent=19 // pred_check
          %p430 = pneg %p106
        $region30: #{tpu_custom_call.1} parent=19 // pred_check_branch
          %432 = sbr.rel (%p430) target = $region32
        $region31: #{tpu_custom_call.1} parent=19 // pred_region
          %p433 = scmp.lt.s32.totalorder %s29, 1
          %s434 = scalar_select %p433, %s29, 1
          %s435 = smul.addr %s434, 8
          %s436 = scalar_lea.vmem %s2, %s435
        $region32: #{tpu_custom_call.1} parent=19 // pred_fallthru
          _
        // Predicated region
        $region33: #{tpu_custom_call.1} parent=19 // pred_check
          %p437 = pneg %p132
        $region34: #{tpu_custom_call.1} parent=19 // pred_check_branch
          %439 = sbr.rel (%p437) target = $region36
        $region35: #{tpu_custom_call.1} parent=19 // pred_region
          %p440 = scmp.lt.s32.totalorder %s29, 1
          %s441 = scalar_select %p440, %s29, 1
          %s442 = smul.addr %s441, 8
          %s443 = scalar_lea.vmem %s3, %s442
        $region36: #{tpu_custom_call.1} parent=19 // pred_fallthru
          _
        // Predicated region
        $region37: #{tpu_custom_call.1} parent=19 // pred_check
          %p444 = pneg %p158
        $region38: #{tpu_custom_call.1} parent=19 // pred_check_branch
          %446 = sbr.rel (%p444) target = $region40
        $region39: #{tpu_custom_call.1} parent=19 // pred_region
          %p447 = scmp.lt.s32.totalorder %s29, 1
          %s448 = scalar_select %p447, %s29, 1
          %s449 = smul.addr %s448, 8
          %s450 = scalar_lea.vmem %s4, %s449
        $region40: #{tpu_custom_call.1} parent=19 // pred_fallthru
          _
        // Predicated region
        $region41: #{tpu_custom_call.1} parent=19 // pred_check
          %p451 = pneg %p184
        $region42: #{tpu_custom_call.1} parent=19 // pred_check_branch
          %453 = sbr.rel (%p451) target = $region44
        $region43: #{tpu_custom_call.1} parent=19 // pred_region
          %p454 = scmp.lt.s32.totalorder %s29, 1
          %s455 = scalar_select %p454, %s29, 1
          %s456 = smul.addr %s455, 8
          %s457 = scalar_lea.vmem %s5, %s456
        $region44: #{tpu_custom_call.1} parent=19 // pred_fallthru
          _
        // Predicated region
        $region45: #{tpu_custom_call.1} parent=19 // pred_check
          %p458 = pneg %p210
        $region46: #{tpu_custom_call.1} parent=19 // pred_check_branch
          %460 = sbr.rel (%p458) target = $region48
        $region47: #{tpu_custom_call.1} parent=19 // pred_region
          %p461 = scmp.lt.s32.totalorder %s30, 1
          %s462 = scalar_select %p461, %s30, 1
          %s463 = smul.addr %s462, 8
          %s464 = smul.addr %s463, 4
          %s465 = scalar_lea.vmem %s6, %s464
        $region48: #{tpu_custom_call.1} parent=19 // pred_fallthru
          _
        // Predicated region
        $region49: #{tpu_custom_call.1} parent=19 // pred_check
          %p466 = pneg %p236
        $region50: #{tpu_custom_call.1} parent=19 // pred_check_branch
          %468 = sbr.rel (%p466) target = $region52
        $region51: #{tpu_custom_call.1} parent=19 // pred_region
          %p469 = scmp.lt.s32.totalorder %s30, 1
          %s470 = scalar_select %p469, %s30, 1
          %s471 = smul.addr %s470, 8
          %s472 = smul.addr %s471, 4
          %s473 = scalar_lea.vmem %s7, %s472
        $region52: #{tpu_custom_call.1} parent=19 // pred_fallthru
          _
        // Predicated region
        $region53: #{tpu_custom_call.1} parent=19 // pred_check
          %p474 = pneg %p262
        $region54: #{tpu_custom_call.1} parent=19 // pred_check_branch
          %476 = sbr.rel (%p474) target = $region56
        $region55: #{tpu_custom_call.1} parent=19 // pred_region
          %p477 = scmp.lt.s32.totalorder %s30, 1
          %s478 = scalar_select %p477, %s30, 1
          %s479 = smul.addr %s478, 4
          %s480 = smul.addr %s479, 4
          %s481 = scalar_lea.vmem %s8, %s480
        $region56: #{tpu_custom_call.1} parent=19 // pred_fallthru
          _
        // Predicated region
        $region57: #{tpu_custom_call.1} parent=19 // pred_check
          %p482 = pneg %p288
        $region58: #{tpu_custom_call.1} parent=19 // pred_check_branch
          %484 = sbr.rel (%p482) target = $region60
        $region59: #{tpu_custom_call.1} parent=19 // pred_region
          %p485 = scmp.lt.s32.totalorder %s30, 1
          %s486 = scalar_select %p485, %s30, 1
          %s487 = smul.addr %s486, 8
          %s488 = smul.addr %s487, 4
          %s489 = scalar_lea.vmem %s9, %s488
        $region60: #{tpu_custom_call.1} parent=19 // pred_fallthru
          _
        // Predicated region
        $region61: #{tpu_custom_call.1} parent=19 // pred_check
          %p490 = pneg %p314
        $region62: #{tpu_custom_call.1} parent=19 // pred_check_branch
          %492 = sbr.rel (%p490) target = $region64
        $region63: #{tpu_custom_call.1} parent=19 // pred_region
          %p493 = scmp.lt.s32.totalorder %s30, 1
          %s494 = scalar_select %p493, %s30, 1
          %s495 = scalar_lea.vmem %s10, %s494
        $region64: #{tpu_custom_call.1} parent=19 // pred_fallthru
          _
        // Predicated region
        $region65: #{tpu_custom_call.1} parent=19 // pred_check
          %p496 = pneg %p340
        $region66: #{tpu_custom_call.1} parent=19 // pred_check_branch
          %498 = sbr.rel (%p496) target = $region68
        $region67: #{tpu_custom_call.1} parent=19 // pred_region
          %p499 = scmp.lt.s32.totalorder %s30, 1
          %s500 = scalar_select %p499, %s30, 1
          %s501 = scalar_lea.vmem %s11, %s500
        $region68: #{tpu_custom_call.1} parent=19 // pred_fallthru
          _
      $region20: #{tpu_custom_call.1} parent=5 // pred_fallthru
        _
      %p502 = scmp.le.s32.totalorder 1, %s22
      %p503 = scmp.lt.s32.totalorder %s22, 5
      %p504 = pnand %p502, %p503
      %p505 = pneg %p504
      // Predicated region
      $region69: #{tpu_custom_call.1} parent=5 // pred_check
        _
      $region70: #{tpu_custom_call.1} parent=5 // pred_check_branch
        %507 = sbr.rel (%p504) target = $region72
      $region71: #{tpu_custom_call.1} parent=5 // pred_region
        %s508 = ssub.s32 %s22, 1
        %p509 = scmp.lt.s32.totalorder %s31, 1
        %s510 = scalar_select %p509, %s31, 1
        %s511 = smul.addr %s510, 8
        %s512 = scalar_lea.vmem %s0, %s511
        %p513 = pneg %p60
        %p514 = pneg %p57
        %p515 = scmp.lt.s32.totalorder %s31, 1
        %s516 = scalar_select %p515, %s31, 1
        %s517 = smul.addr %s516, 2
        %s518 = smul.addr %s517, 8
        %s519 = scalar_lea.vmem %s1, %s518
        %p520 = pneg %p86
        %p521 = pneg %p83
        %p522 = scmp.lt.s32.totalorder %s31, 1
        %s523 = scalar_select %p522, %s31, 1
        %s524 = smul.addr %s523, 8
        %s525 = scalar_lea.vmem %s2, %s524
        %p526 = pneg %p112
        %p527 = pneg %p109
        %p528 = scmp.lt.s32.totalorder %s31, 1
        %s529 = scalar_select %p528, %s31, 1
        %s530 = smul.addr %s529, 8
        %s531 = scalar_lea.vmem %s3, %s530
        %p532 = pneg %p138
        %p533 = pneg %p135
        %p534 = scmp.lt.s32.totalorder %s31, 1
        %s535 = scalar_select %p534, %s31, 1
        %s536 = smul.addr %s535, 8
        %s537 = scalar_lea.vmem %s4, %s536
        %p538 = pneg %p164
        %p539 = pneg %p161
        %p540 = scmp.lt.s32.totalorder %s31, 1
        %s541 = scalar_select %p540, %s31, 1
        %s542 = smul.addr %s541, 8
        %s543 = scalar_lea.vmem %s5, %s542
        %p544 = pneg %p190
        %p545 = pneg %p187
        %p546 = scmp.lt.s32.totalorder %s32, 1
        %s547 = scalar_select %p546, %s32, 1
        %s548 = smul.addr %s547, 8
        %s549 = smul.addr %s548, 4
        %s550 = scalar_lea.vmem %s6, %s549
        %p551 = pneg %p216
        %p552 = pneg %p213
        %p553 = scmp.lt.s32.totalorder %s32, 1
        %s554 = scalar_select %p553, %s32, 1
        %s555 = smul.addr %s554, 8
        %s556 = smul.addr %s555, 4
        %s557 = scalar_lea.vmem %s7, %s556
        %p558 = pneg %p242
        %p559 = pneg %p239
        %p560 = scmp.lt.s32.totalorder %s32, 1
        %s561 = scalar_select %p560, %s32, 1
        %s562 = smul.addr %s561, 4
        %s563 = smul.addr %s562, 4
        %s564 = scalar_lea.vmem %s8, %s563
        %p565 = pneg %p268
        %p566 = pneg %p265
        %p567 = scmp.lt.s32.totalorder %s32, 1
        %s568 = scalar_select %p567, %s32, 1
        %s569 = smul.addr %s568, 8
        %s570 = smul.addr %s569, 4
        %s571 = scalar_lea.vmem %s9, %s570
        %p572 = pneg %p294
        %p573 = pneg %p291
        %p574 = scmp.lt.s32.totalorder %s32, 1
        %s575 = scalar_select %p574, %s32, 1
        %s576 = scalar_lea.vmem %s10, %s575
        %p577 = pneg %p320
        %p578 = pneg %p317
        %p579 = scmp.lt.s32.totalorder %s32, 1
        %s580 = scalar_select %p579, %s32, 1
        %s581 = scalar_lea.vmem %s11, %s580
        %p582 = pneg %p346
        %p583 = pneg %p343
        %p584 = pneg %p367
        %p585 = pneg %p364
        %p586 = pneg %p393
        %p587 = pneg %p390
        %s588 = sand.u32 %s380, 1
        %s589 = scalar_lea.sflag [#allocation4], %s588
        %s590 = sand.u32 %s380, 1
        %s591 = smul.addr %s590, 8
        %s592 = scalar_lea.vmem [#allocation3], %s591
        %p593 = scmp.lt.s32.totalorder %s31, 1
        %s594 = scalar_select %p593, %s31, 1
        %s595 = smul.addr %s594, 8
        %s596 = scalar_lea.vmem %s0, %s595
        %p597 = scmp.lt.s32.totalorder %s31, 1
        %s598 = scalar_select %p597, %s31, 1
        %s599 = smul.addr %s598, 2
        %s600 = smul.addr %s599, 8
        %s601 = scalar_lea.vmem %s1, %s600
        %p602 = scmp.lt.s32.totalorder %s31, 1
        %s603 = scalar_select %p602, %s31, 1
        %s604 = smul.addr %s603, 8
        %s605 = scalar_lea.vmem %s2, %s604
        %p606 = scmp.lt.s32.totalorder %s31, 1
        %s607 = scalar_select %p606, %s31, 1
        %s608 = smul.addr %s607, 8
        %s609 = scalar_lea.vmem %s3, %s608
        %p610 = scmp.lt.s32.totalorder %s31, 1
        %s611 = scalar_select %p610, %s31, 1
        %s612 = smul.addr %s611, 8
        %s613 = scalar_lea.vmem %s4, %s612
        %p614 = scmp.lt.s32.totalorder %s31, 1
        %s615 = scalar_select %p614, %s31, 1
        %s616 = smul.addr %s615, 8
        %s617 = scalar_lea.vmem %s5, %s616
        %p618 = scmp.lt.s32.totalorder %s32, 1
        %s619 = scalar_select %p618, %s32, 1
        %s620 = smul.addr %s619, 8
        %s621 = smul.addr %s620, 4
        %s622 = scalar_lea.vmem %s6, %s621
        %p623 = scmp.lt.s32.totalorder %s32, 1
        %s624 = scalar_select %p623, %s32, 1
        %s625 = smul.addr %s624, 8
        %s626 = smul.addr %s625, 4
        %s627 = scalar_lea.vmem %s7, %s626
        %p628 = scmp.lt.s32.totalorder %s32, 1
        %s629 = scalar_select %p628, %s32, 1
        %s630 = smul.addr %s629, 4
        %s631 = smul.addr %s630, 4
        %s632 = scalar_lea.vmem %s8, %s631
        %p633 = scmp.lt.s32.totalorder %s32, 1
        %s634 = scalar_select %p633, %s32, 1
        %s635 = smul.addr %s634, 8
        %s636 = smul.addr %s635, 4
        %s637 = scalar_lea.vmem %s9, %s636
        %p638 = scmp.lt.s32.totalorder %s32, 1
        %s639 = scalar_select %p638, %s32, 1
        %s640 = scalar_lea.vmem %s10, %s639
        %p641 = scmp.lt.s32.totalorder %s32, 1
        %s642 = scalar_select %p641, %s32, 1
        %s643 = scalar_lea.vmem %s11, %s642
        %p645 = scmp.eq.s32.totalorder %s32, 0
        // Predicated region
        $region73: #{tpu_custom_call.1} parent=71 // pred_check
          %p646 = pneg %p645
        $region74: #{tpu_custom_call.1} parent=71 // pred_check_branch
          %648 = sbr.rel (%p646) target = $region76
        $region75: #{tpu_custom_call.1} parent=71 // pred_region
          %v649 = vld [vmem:[%s596] sm:$0xff]
          %v650 = vmul.f32 %v649, 5.656854
          %vm651 = vcmask 261120
          %652 = vst.msk [vmem:[#allocation2] sm:$0xff] %vm651, %v650
        $region76: #{tpu_custom_call.1} parent=71 // pred_fallthru
          _
        %v653 = vld [vmem:[#allocation2] sm:$0xff]
        %v654 = vld [vmem:[%s640] sm:$0x1]
        %v655 = vmul.f32 %v653, %v653
        %vm656 = vcmask 261120
        %v657 = vsel %vm656, %v655, 0.0
        %658 = vadd.xlane.f32.xlu0 %v657
        %v659 = vpop.xlane.xlu0 %658
        %v660 = vrcp.pop 32.0
        %v661 = vmul.f32 32.0, %v660
        %v662 = vsub.f32 1.0, %v661
        %v663 = vmul.f32 %v660, %v662
        %v664 = vadd.f32 %v660, %v663
        %vm665 = vweird.f32 %v660
        %v666 = vsel %vm665, %v660, %v664
        %v667 = vmul.f32 %v659, %v666
        %v668 = vadd.f32 %v667, 1e-06
        %v669 = vrsqrt.pop %v668
        %v670 = vmul.f32 %v669, %v668
        %v671 = vmul.f32 %v670, %v669
        %v672 = vmul.f32 0.5, %v671
        %v673 = vsub.f32 1.5, %v672
        %v674 = vmul.f32 %v669, %v673
        %vm675 = vweird.f32 %v668
        %vm676 = vweird.f32 %v669
        %vm677 = vmor %vm675, %vm676
        %v678 = vsel %vm677, %v669, %v674
        %v679 = vmul.f32 %v653, %v678
        %v680 = vadd.f32 %v654, 1.0
        %v682 = vperm.slane %v680, 0
        %v684 = vmul.f32 %v679, %v682
        %v685 = vpack.c.bf16 %v684, %v684
        %v686 = vld [vmem:[%s622] sm:$0xff]
        %v687 = vld [vmem:[%s622 + $0x8] sm:$0xff]
        %v688 = vld [vmem:[%s622 + $0x10] sm:$0xff]
        %v689 = vld [vmem:[%s622 + $0x18] sm:$0xff]
        %v694 = vunpack.c.l.b16 %v686
        %v695 = vunpack.c.h.b16 %v686
        %v696 = vunpack.c.l.b16 %v687
        %v697 = vunpack.c.h.b16 %v687
        %v698 = vunpack.c.l.b16 %v688
        %v699 = vunpack.c.h.b16 %v688
        %v700 = vunpack.c.l.b16 %v689
        %v701 = vunpack.c.h.b16 %v689
        %v702 = vpack.c.b16 %v696, %v694
        %v703 = vpack.c.b16 %v697, %v695
        %v704 = vpack.c.b16 %v700, %v698
        %v705 = vpack.c.b16 %v701, %v699
        %v711 = vsel %vm656, %v685, 0
        %713 = vmatpush.bf16.msra.mxu0 0
        %714 = vmatpush.bf16.msra.mxu0 0
        %715 = vmatpush.bf16.msra.mxu0 0
        %716 = vmatpush.bf16.msra.mxu0 0
        %717 = vmatpush.bf16.msra.mxu0 0
        %718 = vmatpush.bf16.msra.mxu0 0
        %719 = vmatpush.bf16.msra.mxu0 %v704
        %720 = vmatpush.bf16.msra.mxu0 %v702
        %721 = vmatmul.bf16.gmra.mxu0 %v711
        %v722 = vpop.f32.mrf.mxu0
        %v723 = vadd.f32 0.0, %v722
        %v724 = vpop.f32.mrf.mxu0
        %725 = vdwg.mxu0
        %726 = vmatpush.bf16.msra.mxu0 0
        %727 = vmatpush.bf16.msra.mxu0 0
        %728 = vmatpush.bf16.msra.mxu0 0
        %729 = vmatpush.bf16.msra.mxu0 0
        %730 = vmatpush.bf16.msra.mxu0 0
        %731 = vmatpush.bf16.msra.mxu0 0
        %732 = vmatpush.bf16.msra.mxu0 %v705
        %733 = vmatpush.bf16.msra.mxu0 %v703
        %734 = vmatmul.bf16.gmra.mxu0 %v711
        %v735 = vpop.f32.mrf.mxu0
        %v736 = vadd.f32 0.0, %v735
        %v737 = vpop.f32.mrf.mxu0
        %738 = vdwg.mxu0
        %v739 = vld [vmem:[%s605] sm:$0xff]
        %v740 = vmul.f32 %v723, %v739
        %v741 = vld [vmem:[%s609] sm:$0xff]
        %v742 = vmul.f32 %v736, %v741
        %v743 = vadd.f32 %v740, %v742
        %v744 = vld [vmem:[%s613] sm:$0xff]
        %746 = vrot.lane.b32.xlu0 %v744, 64
        %v747 = vpop.permute.xlu0 %746
        %v749 = vmul.f32 %v723, %v747
        %v750 = vld [vmem:[%s617] sm:$0xff]
        %752 = vrot.lane.b32.xlu0 %v750, 64
        %v753 = vpop.permute.xlu0 %752
        %v755 = vmul.f32 %v736, %v753
        %v756 = vadd.f32 %v749, %v755
        %758 = vrot.lane.b32.xlu0 %v743, 112
        %v759 = vpop.permute.xlu0 %758
        %761 = vrot.lane.b32.xlu0 %v743, 96
        %v762 = vpop.permute.xlu0 %761
        %763 = vrot.lane.b32.xlu0 %v759, 96
        %v764 = vpop.permute.xlu0 %763
        %768 = vrot.lane.b32.xlu0 %v756, 112
        %v769 = vpop.permute.xlu0 %768
        %772 = vrot.lane.b32.xlu0 %v723, 112
        %v773 = vpop.permute.xlu0 %772
        %v775 = vpack.c.bf16 %v743, %v743
        %v776 = vpack.c.bf16 %v759, %v759
        %v777 = vpack.c.bf16 %v762, %v762
        %v778 = vpack.c.bf16 %v764, %v764
        %v779 = vpack.c.bf16 %v756, %v756
        %v780 = vpack.c.bf16 %v769, %v769
        %v781 = vld [vmem:[%s601] sm:$0xff]
        %v782 = vld [vmem:[%s601 + $0x8] sm:$0xff]
        %v785 = vunpack.c.l.b16 %v775
        %v786 = vunpack.c.l.b16 %v776
        %v787 = vpack.c.b16 %v786, %v785
        %v789 = vunpack.c.l.b16 %v779
        %v790 = vpack.c.b16 %v789, %v789
        %791 = vrot.lane.b32.xlu0 %v790, 64
        %v792 = vpop.permute.xlu0 %791
        %vm793 = vcmask 130048
        %v795 = vsel %vm793, %v787, 0
        %v798 = vsel %vm793, %v792, 0
        %800 = vmatpush.bf16.xpose.msra.mxu0 0
        %801 = vmatpush.bf16.xpose.msra.mxu0 0
        %802 = vmatpush.bf16.xpose.msra.mxu0 0
        %803 = vmatpush.bf16.xpose.msra.mxu0 0
        %804 = vmatpush.bf16.xpose.msra.mxu0 0
        %805 = vmatpush.bf16.xpose.msra.mxu0 0
        %806 = vmatpush.bf16.xpose.msra.mxu0 0
        %807 = vmatpush.bf16.xpose.msra.mxu0 %v798
        %808 = vmatmul.bf16.gmra.mxu0 %v795
        %v809 = vpop.f32.mrf.mxu0
        %v810 = vadd.f32 %v781, %v809
        %v811 = vpop.f32.mrf.mxu0
        %v812 = vadd.f32 %v782, %v811
        %813 = vdwg.mxu0
        %v816 = vunpack.c.l.b16 %v777
        %v817 = vunpack.c.l.b16 %v778
        %v818 = vpack.c.b16 %v817, %v816
        %v820 = vunpack.c.l.b16 %v780
        %v821 = vpack.c.b16 %v820, %v820
        %822 = vrot.lane.b32.xlu0 %v821, 64
        %v823 = vpop.permute.xlu0 %822
        %v825 = vsel %vm793, %v818, 0
        %v828 = vsel %vm793, %v823, 0
        %830 = vmatpush.bf16.xpose.msra.mxu0 0
        %831 = vmatpush.bf16.xpose.msra.mxu0 0
        %832 = vmatpush.bf16.xpose.msra.mxu0 0
        %833 = vmatpush.bf16.xpose.msra.mxu0 0
        %834 = vmatpush.bf16.xpose.msra.mxu0 0
        %835 = vmatpush.bf16.xpose.msra.mxu0 0
        %836 = vmatpush.bf16.xpose.msra.mxu0 0
        %837 = vmatpush.bf16.xpose.msra.mxu0 %v828
        %838 = vmatmul.bf16.gmra.mxu0 %v825
        %v839 = vpop.f32.mrf.mxu0
        %v840 = vadd.f32 %v781, %v839
        %v841 = vpop.f32.mrf.mxu0
        %v842 = vadd.f32 %v782, %v841
        %843 = vdwg.mxu0
        %vm844 = vcmask 64512
        %v845 = vsel %vm844, %v810, -inf
        %846 = vmax.xlane.f32.xlu0 %v845
        %v847 = vpop.xlane.xlu0 %846
        %v848 = vsel %vm844, %v812, -inf
        %849 = vmax.xlane.f32.xlu0 %v848
        %v850 = vpop.xlane.xlu0 %849
        %v851 = vsel %vm844, %v840, -inf
        %852 = vmax.xlane.f32.xlu0 %v851
        %v853 = vpop.xlane.xlu0 %852
        %v854 = vsel %vm844, %v842, -inf
        %855 = vmax.xlane.f32.xlu0 %v854
        %v856 = vpop.xlane.xlu0 %855
        %v857 = vsub.f32 %v810, %v847
        %v858 = vsub.f32 %v812, %v850
        %v859 = vsub.f32 %v840, %v853
        %v860 = vsub.f32 %v842, %v856
        %v861 = vmul.f32 %v857, 1.442695
        %v862 = vpow.pop %v861
        %v863 = vmul.f32 %v858, 1.442695
        %v864 = vpow.pop %v863
        %v865 = vmul.f32 %v859, 1.442695
        %v866 = vpow.pop %v865
        %v867 = vmul.f32 %v860, 1.442695
        %v868 = vpow.pop %v867
        %v869 = vsel %vm844, %v862, 0.0
        %870 = vadd.xlane.f32.xlu0 %v869
        %v871 = vpop.xlane.xlu0 %870
        %v872 = vsel %vm844, %v864, 0.0
        %873 = vadd.xlane.f32.xlu0 %v872
        %v874 = vpop.xlane.xlu0 %873
        %v875 = vsel %vm844, %v866, 0.0
        %876 = vadd.xlane.f32.xlu0 %v875
        %v877 = vpop.xlane.xlu0 %876
        %v878 = vsel %vm844, %v868, 0.0
        %879 = vadd.xlane.f32.xlu0 %v878
        %v880 = vpop.xlane.xlu0 %879
        %v881 = vrcp.pop %v871
        %v882 = vrcp.pop %v874
        %v883 = vrcp.pop %v877
        %v884 = vrcp.pop %v880
        %v885 = vmul.f32 %v862, %v881
        %v886 = vmul.f32 %v864, %v882
        %v887 = vmul.f32 %v866, %v883
        %v888 = vmul.f32 %v868, %v884
        %v889 = vpack.c.bf16 %v885, %v885
        %v890 = vpack.c.bf16 %v886, %v886
        %v891 = vpack.c.bf16 %v887, %v887
        %v892 = vpack.c.bf16 %v888, %v888
        %v893 = vpack.c.bf16 %v723, %v723
        %v894 = vpack.c.bf16 %v773, %v773
        %v897 = vunpack.c.l.b16 %v889
        %v898 = vunpack.c.l.b16 %v890
        %v899 = vpack.c.b16 %v898, %v897
        %v901 = vunpack.c.l.b16 %v893
        %v902 = vpack.c.b16 %v901, %v901
        %903 = vrot.lane.b32.xlu0 %v902, 32
        %v904 = vpop.permute.xlu0 %903
        %v906 = vsel %vm844, %v899, 0
        %vm908 = vcmask 1043456
        %v910 = vsel %vm908, %v904, 0
        %912 = vmatpush.bf16.msra.mxu0 0
        %913 = vmatpush.bf16.msra.mxu0 0
        %914 = vmatpush.bf16.msra.mxu0 0
        %915 = vmatpush.bf16.msra.mxu0 0
        %916 = vmatpush.bf16.msra.mxu0 0
        %917 = vmatpush.bf16.msra.mxu0 0
        %918 = vmatpush.bf16.msra.mxu0 0
        %919 = vmatpush.bf16.msra.mxu0 %v910
        %920 = vmatmul.bf16.gmra.mxu0 %v906
        %v921 = vpop.f32.mrf.mxu0
        %v922 = vadd.f32 0.0, %v921
        %v923 = vpop.f32.mrf.mxu0
        %v924 = vadd.f32 0.0, %v923
        %925 = vdwg.mxu0
        %v928 = vunpack.c.l.b16 %v891
        %v929 = vunpack.c.l.b16 %v892
        %v930 = vpack.c.b16 %v929, %v928
        %v932 = vunpack.c.l.b16 %v894
        %v933 = vpack.c.b16 %v932, %v932
        %934 = vrot.lane.b32.xlu0 %v933, 32
        %v935 = vpop.permute.xlu0 %934
        %v937 = vsel %vm844, %v930, 0
        %v940 = vsel %vm908, %v935, 0
        %942 = vmatpush.bf16.msra.mxu0 0
        %943 = vmatpush.bf16.msra.mxu0 0
        %944 = vmatpush.bf16.msra.mxu0 0
        %945 = vmatpush.bf16.msra.mxu0 0
        %946 = vmatpush.bf16.msra.mxu0 0
        %947 = vmatpush.bf16.msra.mxu0 0
        %948 = vmatpush.bf16.msra.mxu0 0
        %949 = vmatpush.bf16.msra.mxu0 %v940
        %950 = vmatmul.bf16.gmra.mxu0 %v937
        %v951 = vpop.f32.mrf.mxu0
        %v952 = vadd.f32 0.0, %v951
        %v953 = vpop.f32.mrf.mxu0
        %v954 = vadd.f32 0.0, %v953
        %955 = vdwg.mxu0
        %957 = vrot.lane.b32.xlu0 %v924, 16
        %v958 = vpop.permute.xlu0 %957
        %961 = vrot.lane.b32.xlu0 %v952, 32
        %v962 = vpop.permute.xlu0 %961
        %965 = vrot.lane.b32.xlu0 %v954, 48
        %v966 = vpop.permute.xlu0 %965
        %v968 = vsel %vm793, %v922, %v958
        %v969 = vsel %vm656, %v968, %v962
        %vm970 = vcmask 392192
        %v971 = vsel %vm970, %v969, %v966
        %v972 = vpack.c.bf16 %v971, %v971
        %v973 = vld [vmem:[%s627] sm:$0xf]
        %v974 = vld [vmem:[%s627 + $0x4] sm:$0xf]
        %v975 = vld [vmem:[%s627 + $0x8] sm:$0xf]
        %v976 = vld [vmem:[%s627 + $0xc] sm:$0xf]
        %v977 = vld [vmem:[%s627 + $0x10] sm:$0xf]
        %v978 = vld [vmem:[%s627 + $0x14] sm:$0xf]
        %v979 = vld [vmem:[%s627 + $0x18] sm:$0xf]
        %v980 = vld [vmem:[%s627 + $0x1c] sm:$0xf]
        %v989 = vunpack.c.l.b16 %v973
        %v990 = vunpack.c.l.b16 %v974
        %v991 = vunpack.c.l.b16 %v975
        %v992 = vunpack.c.l.b16 %v976
        %v993 = vunpack.c.l.b16 %v977
        %v994 = vunpack.c.l.b16 %v978
        %v995 = vunpack.c.l.b16 %v979
        %v996 = vunpack.c.l.b16 %v980
        %v997 = vpack.c.b16 %v990, %v989
        %v998 = vpack.c.b16 %v992, %v991
        %v999 = vpack.c.b16 %v994, %v993
        %v1000 = vpack.c.b16 %v996, %v995
        %vm1005 = vcmask 523264
        %v1007 = vsel %vm1005, %v972, 0
        %1009 = vmatpush.bf16.msra.mxu0 0
        %1010 = vmatpush.bf16.msra.mxu0 0
        %1011 = vmatpush.bf16.msra.mxu0 0
        %1012 = vmatpush.bf16.msra.mxu0 0
        %1013 = vmatpush.bf16.msra.mxu0 %v1000
        %1014 = vmatpush.bf16.msra.mxu0 %v999
        %1015 = vmatpush.bf16.msra.mxu0 %v998
        %1016 = vmatpush.bf16.msra.mxu0 %v997
        %1017 = vmatmul.bf16.gmra.mxu0 %v1007
        %v1018 = vpop.f32.mrf.mxu0
        %v1019 = vadd.f32 0.0, %v1018
        %v1020 = vpop.f32.mrf.mxu0
        %1021 = vdwg.mxu0
        %v1022 = vadd.f32 %v653, %v1019
        %v1023 = vld [vmem:[%s643] sm:$0x1]
        %v1024 = vmul.f32 %v1022, %v1022
        %v1025 = vsel %vm656, %v1024, 0.0
        %1026 = vadd.xlane.f32.xlu0 %v1025
        %v1027 = vpop.xlane.xlu0 %1026
        %v1028 = vmul.f32 %v1027, %v666
        %v1029 = vadd.f32 %v1028, 1e-06
        %v1030 = vrsqrt.pop %v1029
        %v1031 = vmul.f32 %v1030, %v1029
        %v1032 = vmul.f32 %v1031, %v1030
        %v1033 = vmul.f32 0.5, %v1032
        %v1034 = vsub.f32 1.5, %v1033
        %v1035 = vmul.f32 %v1030, %v1034
        %vm1036 = vweird.f32 %v1029
        %vm1037 = vweird.f32 %v1030
        %vm1038 = vmor %vm1036, %vm1037
        %v1039 = vsel %vm1038, %v1030, %v1035
        %v1040 = vmul.f32 %v1022, %v1039
        %v1041 = vadd.f32 %v1023, 1.0
        %v1043 = vperm.slane %v1041, 0
        %v1045 = vmul.f32 %v1040, %v1043
        %v1046 = vpack.c.bf16 %v1045, %v1045
        %v1047 = vld [vmem:[%s632] sm:$0xf]
        %v1048 = vld [vmem:[%s632 + $0x4] sm:$0xf]
        %v1049 = vld [vmem:[%s632 + $0x8] sm:$0xf]
        %v1050 = vld [vmem:[%s632 + $0xc] sm:$0xf]
        %v1055 = vunpack.c.l.b16 %v1047
        %v1056 = vunpack.c.l.b16 %v1048
        %v1057 = vunpack.c.l.b16 %v1049
        %v1058 = vunpack.c.l.b16 %v1050
        %v1059 = vpack.c.b16 %v1056, %v1055
        %v1060 = vpack.c.b16 %v1058, %v1057
        %v1064 = vsel %vm656, %v1046, 0
        %1066 = vmatpush.bf16.msra.mxu0 0
        %1067 = vmatpush.bf16.msra.mxu0 0
        %1068 = vmatpush.bf16.msra.mxu0 0
        %1069 = vmatpush.bf16.msra.mxu0 0
        %1070 = vmatpush.bf16.msra.mxu0 0
        %1071 = vmatpush.bf16.msra.mxu0 0
        %1072 = vmatpush.bf16.msra.mxu0 %v1060
        %1073 = vmatpush.bf16.msra.mxu0 %v1059
        %1074 = vmatmul.bf16.gmra.mxu0 %v1064
        %v1075 = vpop.f32.mrf.mxu0
        %v1076 = vadd.f32 0.0, %v1075
        %v1077 = vpop.f32.mrf.mxu0
        %1078 = vdwg.mxu0
        %v1079 = vmul.f32 %v1076, 0.5
        %v1080 = vmul.f32 %v1076, 0.044715
        %v1081 = vmul.f32 %v1080, %v1076
        %v1082 = vmul.f32 %v1081, %v1076
        %v1083 = vadd.f32 %v1076, %v1082
        %v1084 = vmul.f32 %v1083, 0.7978846
        %v1085 = vtanh.pop %v1084
        %v1086 = vadd.f32 %v1085, 1.0
        %v1087 = vmul.f32 %v1079, %v1086
        %1089 = vrot.lane.b32.xlu0 %v1076, 64
        %v1090 = vpop.permute.xlu0 %1089
        %v1092 = vmul.f32 %v1087, %v1090
        %v1093 = vpack.c.bf16 %v1092, %v1092
        %v1094 = vld [vmem:[%s637] sm:$0xf]
        %v1095 = vld [vmem:[%s637 + $0x4] sm:$0xf]
        %v1096 = vld [vmem:[%s637 + $0x8] sm:$0xf]
        %v1097 = vld [vmem:[%s637 + $0xc] sm:$0xf]
        %v1098 = vld [vmem:[%s637 + $0x10] sm:$0xf]
        %v1099 = vld [vmem:[%s637 + $0x14] sm:$0xf]
        %v1100 = vld [vmem:[%s637 + $0x18] sm:$0xf]
        %v1101 = vld [vmem:[%s637 + $0x1c] sm:$0xf]
        %v1110 = vunpack.c.l.b16 %v1094
        %v1111 = vunpack.c.l.b16 %v1095
        %v1112 = vunpack.c.l.b16 %v1096
        %v1113 = vunpack.c.l.b16 %v1097
        %v1114 = vunpack.c.l.b16 %v1098
        %v1115 = vunpack.c.l.b16 %v1099
        %v1116 = vunpack.c.l.b16 %v1100
        %v1117 = vunpack.c.l.b16 %v1101
        %v1118 = vpack.c.b16 %v1111, %v1110
        %v1119 = vpack.c.b16 %v1113, %v1112
        %v1120 = vpack.c.b16 %v1115, %v1114
        %v1121 = vpack.c.b16 %v1117, %v1116
        %v1127 = vsel %vm1005, %v1093, 0
        %1129 = vmatpush.bf16.msra.mxu0 0
        %1130 = vmatpush.bf16.msra.mxu0 0
        %1131 = vmatpush.bf16.msra.mxu0 0
        %1132 = vmatpush.bf16.msra.mxu0 0
        %1133 = vmatpush.bf16.msra.mxu0 %v1121
        %1134 = vmatpush.bf16.msra.mxu0 %v1120
        %1135 = vmatpush.bf16.msra.mxu0 %v1119
        %1136 = vmatpush.bf16.msra.mxu0 %v1118
        %1137 = vmatmul.bf16.gmra.mxu0 %v1127
        %v1138 = vpop.f32.mrf.mxu0
        %v1139 = vadd.f32 0.0, %v1138
        %v1140 = vpop.f32.mrf.mxu0
        %1141 = vdwg.mxu0
        %v1142 = vadd.f32 %v1022, %v1139
        %1143 = vst.msk [vmem:[#allocation2] sm:$0xff] %vm656, %v1142
        %p1144 = scmp.eq.s32.totalorder %s32, 1
        // Predicated region
        $region77: #{tpu_custom_call.1} parent=71 // pred_check
          %p1145 = pneg %p1144
        $region78: #{tpu_custom_call.1} parent=71 // pred_check_branch
          %1147 = sbr.rel (%p1145) target = $region80
        $region79: #{tpu_custom_call.1} parent=71 // pred_region
          %v1148 = vld [vmem:[%s12] sm:$0x1]
          %v1149 = vmul.f32 %v1142, %v1142
          %v1150 = vsel %vm656, %v1149, 0.0
          %1151 = vadd.xlane.f32.xlu0 %v1150
          %v1152 = vpop.xlane.xlu0 %1151
          %v1153 = vmul.f32 %v1152, %v666
          %v1154 = vadd.f32 %v1153, 1e-06
          %v1155 = vrsqrt.pop %v1154
          %v1156 = vmul.f32 %v1155, %v1154
          %v1157 = vmul.f32 %v1156, %v1155
          %v1158 = vmul.f32 0.5, %v1157
          %v1159 = vsub.f32 1.5, %v1158
          %v1160 = vmul.f32 %v1155, %v1159
          %vm1161 = vweird.f32 %v1154
          %vm1162 = vweird.f32 %v1155
          %vm1163 = vmor %vm1161, %vm1162
          %v1164 = vsel %vm1163, %v1155, %v1160
          %v1165 = vmul.f32 %v1142, %v1164
          %v1166 = vadd.f32 %v1148, 1.0
          %v1168 = vperm.slane %v1166, 0
          %v1170 = vmul.f32 %v1165, %v1168
          %1171 = vst.msk [vmem:[%s592] sm:$0xff] %vm656, %v1170
        $region80: #{tpu_custom_call.1} parent=71 // pred_fallthru
          _
        %s1172 = sand.u32 %s380, 1
        %s1173 = scalar_lea.sflag [#allocation4], %s1172
        %s1174 = sand.u32 %s380, 1
        %s1175 = smul.addr %s1174, 8
        %s1176 = scalar_lea.vmem [#allocation3], %s1175
        // Predicated region
        $region81: #{tpu_custom_call.1} parent=71 // pred_check
          %p1177 = pneg %p390
        $region82: #{tpu_custom_call.1} parent=71 // pred_check_branch
          %1179 = sbr.rel (%p1177) target = $region84
        $region83: #{tpu_custom_call.1} parent=71 // pred_region
          %1181 = vsyncadd %s1173, 0
          %s1182 = smul.addr %s31, 8
          %s1183 = scalar_lea.hbm %s13, %s1182
          %s1185 = sshll.u32 %s1176, 4
          %s1186 = int_to_ptr.vmem [resolvable:$true] %s1185
          %s1187 = sshll.u32 %s1183, 4
          %s1188 = int_to_ptr.hbm [resolvable:$true] %s1187
          %1190 = dma.vmem_to_hbm [thread:$0]  %s1186, 128, %s1188, %s1173
        $region84: #{tpu_custom_call.1} parent=71 // pred_fallthru
          _
      $region72: #{tpu_custom_call.1} parent=5 // pred_fallthru
        _
      %p1191 = scmp.le.s32.totalorder 2, %s22
      // Predicated region
      $region85: #{tpu_custom_call.1} parent=5 // pred_check
        %p1192 = pneg %p1191
      $region86: #{tpu_custom_call.1} parent=5 // pred_check_branch
        %1194 = sbr.rel (%p1192) target = $region88
      $region87: #{tpu_custom_call.1} parent=5 // pred_region
        %s1195 = ssub.s32 %s22, 2
        // Predicated region
        $region89: #{tpu_custom_call.1} parent=87 // pred_check
          %p1196 = pneg %p396
        $region90: #{tpu_custom_call.1} parent=87 // pred_check_branch
          %1198 = sbr.rel (%p1196) target = $region92
        $region91: #{tpu_custom_call.1} parent=87 // pred_region
          %s1199 = sand.u32 %s381, 1
          %s1200 = scalar_lea.sflag [#allocation4], %s1199
          %s1201 = sand.u32 %s381, 1
          %s1202 = smul.addr %s1201, 8
          %s1203 = scalar_lea.vmem [#allocation3], %s1202
          %1205 = dma.done %s1200, 128
        $region92: #{tpu_custom_call.1} parent=87 // pred_fallthru
          _
      $region88: #{tpu_custom_call.1} parent=5 // pred_fallthru
        _
    $region6: #{tpu_custom_call.1} parent=1 // loop_footer
      %s26 = sadd.s32 1, %s22
    $region7: #{tpu_custom_call.1} parent=1 // loop_footer_branch
      %21 = sbr.rel target = $region3
    $region8: #{tpu_custom_call.1} parent=1 // loop_exit
      _
    %1206 = vsyncpa [#allocation4], 1
    %s1207 = scalar_lea.sflag [#allocation4], 1
    %1208 = vsyncpa %s1207, 1

</llo_original>
